<compile_context>
chip_gen: v6e
topology: v6e:2x2x1
jax: 0.10.0
libtpu: 0.0.40
codegen_flags: <defaults>
</compile_context>

<pallas_src>
import jax
import jax.numpy as jnp
from jax.experimental import pallas as pl
from jax.experimental.pallas import tpu as pltpu

_OUT_PAD = 128  # lane-dense width for the padded final layer


def _round_up(n, m):
    return ((n + m - 1) // m) * m


def _mlp_kernel(x_ref, w1_ref, b1_ref, w2_ref, b2_ref, w3_ref, b3_ref, o_ref):
    # fc1 + ReLU : bf16 x bf16 -> f32 accumulate on the MXU, bias/ReLU in f32.
    x = x_ref[...]
    h1 = jnp.dot(x, w1_ref[...], preferred_element_type=jnp.float32) + b1_ref[...]
    h1 = jnp.maximum(h1, 0.0).astype(jnp.bfloat16)
    # fc2 + ReLU
    h2 = jnp.dot(h1, w2_ref[...], preferred_element_type=jnp.float32) + b2_ref[...]
    h2 = jnp.maximum(h2, 0.0).astype(jnp.bfloat16)
    # fc3 (zero-padded to 128 output lanes) + Tanh (EUP)
    h3 = jnp.dot(h2, w3_ref[...], preferred_element_type=jnp.float32) + b3_ref[...]
    o_ref[...] = jnp.tanh(h3).astype(o_ref.dtype)


def prepare_params(params, weight_dtype=jnp.bfloat16):
    """One-time param prep: bf16 weight cast + lane-dense padding of fc3.

    Hoisted out of the forward so repeated inference does not re-run the
    casts / pads (and their HBM round trips) every call.
    """
    w1, b1, w2, b2, w3, b3 = params
    w3p = jnp.pad(w3, ((0, 0), (0, _OUT_PAD - w3.shape[1])))
    b3p = jnp.pad(b3, ((0, 0), (0, _OUT_PAD - b3.shape[1])))
    return (
        w1.astype(weight_dtype),
        b1.astype(jnp.float32),
        w2.astype(weight_dtype),
        b2.astype(jnp.float32),
        w3p.astype(weight_dtype),
        b3p.astype(jnp.float32),
    )


def distance_regressor_forward(x, prepared_params, *, block_b=512):
    """x: (B, 1024) float32 -> (B, 1) float32. prepared_params from prepare_params()."""
    w1c, b1, w2c, b2, w3c, b3p = prepared_params
    B, F = x.shape
    assert F == 1024

    # Stream x in bf16: halves the dominant per-tile DMA and feeds the bf16 MXU path.
    xc = x.astype(jnp.bfloat16)

    # Tile selection: pick the smallest number of tiles at <= block_b rows each,
    # then size the tile to divide the padded batch tightly (multiple of 8 sublanes).
    num_tiles = max(1, pl.cdiv(B, block_b))
    tb = _round_up(pl.cdiv(B, num_tiles), 8)
    b_pad = num_tiles * tb
    if b_pad != B:
        xc = jnp.pad(xc, ((0, b_pad - B), (0, 0)))
    grid = (num_tiles,)

    resident = lambda shape: pl.BlockSpec(shape, lambda i: (0, 0))

    flops = 2 * b_pad * (1024 * 512 + 512 * 256 + 256 * _OUT_PAD)
    bytes_accessed = (
        xc.size * xc.dtype.itemsize
        + w1c.size * w1c.dtype.itemsize
        + w2c.size * w2c.dtype.itemsize
        + w3c.size * w3c.dtype.itemsize
        + (b1.size + b2.size + b3p.size) * 4
        + b_pad * _OUT_PAD * 4
    )

    out = pl.pallas_call(
        _mlp_kernel,
        out_shape=jax.ShapeDtypeStruct((b_pad, _OUT_PAD), jnp.float32),
        grid_spec=pltpu.PrefetchScalarGridSpec(
            num_scalar_prefetch=0,
            grid=grid,
            in_specs=[
                pl.BlockSpec((tb, 1024), lambda i: (i, 0)),   # x: tiled over batch
                resident(w1c.shape), resident(b1.shape),       # weights/biases resident
                resident(w2c.shape), resident(b2.shape),
                resident(w3c.shape), resident(b3p.shape),
            ],
            out_specs=pl.BlockSpec((tb, _OUT_PAD), lambda i: (i, 0)),
        ),
        compiler_params=pltpu.CompilerParams(
            # Batch tiles are independent -> shard across TCs on v7x when grid >= 2.
            dimension_semantics=("parallel",),
            # Generous scoped-VMEM headroom so block_b up to ~2048 is safe on v5e too.
            vmem_limit_bytes=64 * 1024 * 1024,
        ),
        cost_estimate=pl.CostEstimate(
            flops=flops,
            transcendentals=b_pad * _OUT_PAD,
            bytes_accessed=bytes_accessed,
        ),
    )(xc, w1c, b1, w2c, b2, w3c, b3p)

    # TODO(synk): for very large B, pack 128 row-scalars into the lanes of one
    # output row inside the kernel (XLU transpose) to avoid the 128x-padded
    # output writeback and this slice; left as-is since output traffic is small.
    return out[:B, :1]


def init_params(key):
    """Deterministic init matching nn.Linear shapes (weights stored as (in, out))."""
    k1, k2, k3, k4, k5, k6 = jax.random.split(key, 6)

    def uniform(k, shape, fan_in):
        bound = 1.0 / jnp.sqrt(jnp.float32(fan_in))
        return jax.random.uniform(k, shape, jnp.float32, -bound, bound)

    w1 = uniform(k1, (1024, 512), 1024)
    b1 = uniform(k2, (1, 512), 1024)
    w2 = uniform(k3, (512, 256), 512)
    b2 = uniform(k4, (1, 256), 512)
    w3 = uniform(k5, (256, 1), 256)
    b3 = uniform(k6, (1, 1), 256)
    return (w1, b1, w2, b2, w3, b3)


def reference_forward_f32(x, params):
    """Full f32 semantics of the original nn.Module."""
    w1, b1, w2, b2, w3, b3 = params
    h = jnp.maximum(jnp.dot(x, w1, preferred_element_type=jnp.float32) + b1, 0.0)
    h = jnp.maximum(jnp.dot(h, w2, preferred_element_type=jnp.float32) + b2, 0.0)
    return jnp.tanh(jnp.dot(h, w3, preferred_element_type=jnp.float32) + b3)


def reference_forward_bf16(x, params):
    """Same mixed-precision math as the kernel: bf16 x bf16 dots, f32 accumulate/bias/act."""
    w1, b1, w2, b2, w3, b3 = params
    bf = jnp.bfloat16
    h = jnp.dot(x.astype(bf), w1.astype(bf), preferred_element_type=jnp.float32) + b1
    h = jnp.maximum(h, 0.0).astype(bf)
    h = jnp.dot(h, w2.astype(bf), preferred_element_type=jnp.float32) + b2
    h = jnp.maximum(h, 0.0).astype(bf)
    h = jnp.dot(h, w3.astype(bf), preferred_element_type=jnp.float32) + b3
    return jnp.tanh(h)


if __name__ == "__main__":
    key = jax.random.PRNGKey(0)
    kx, kp = jax.random.split(key)

    # Small, deterministic example: batch=16 rows of the fixed 1024-dim input.
    B = 16
    x = jax.random.normal(kx, (B, 1024), dtype=jnp.float32)
    params = init_params(kp)

    prepared = prepare_params(params)  # one-time weight prep (hoisted out of forward)
    out = distance_regressor_forward(x, prepared)
    out = jax.block_until_ready(out)
    assert out.shape == (B, 1)

    # Strict check: identical mixed-precision math as the kernel.
    ref_bf16 = reference_forward_bf16(x, params)
    assert jnp.allclose(out, ref_bf16, atol=2e-3, rtol=2e-3), "mismatch vs bf16 reference"

    # Sanity check vs the full-f32 module semantics (deviation only from bf16 operands).
    ref_f32 = reference_forward_f32(x, params)
    assert jnp.allclose(out, ref_f32, atol=5e-2, rtol=0.0), "mismatch vs f32 reference"

    print("KERNEL_OK")
</pallas_src>

<mosaic_0001>
module attributes {stable_mosaic.version = 11 : i64} {
  func.func @_mlp_kernel(%arg0: i32, %arg1: memref<16x1024xbf16, #tpu.memory_space<vmem>>, %arg2: memref<1024x512xbf16, #tpu.memory_space<vmem>>, %arg3: memref<1x512xf32, #tpu.memory_space<vmem>>, %arg4: memref<512x256xbf16, #tpu.memory_space<vmem>>, %arg5: memref<1x256xf32, #tpu.memory_space<vmem>>, %arg6: memref<256x128xbf16, #tpu.memory_space<vmem>>, %arg7: memref<1x128xf32, #tpu.memory_space<vmem>>, %arg8: memref<16x128xf32, #tpu.memory_space<vmem>>) attributes {dimension_semantics = [#tpu.dimension_semantics<parallel>], iteration_bounds = array<i64: 1>, scalar_prefetch = 0 : i64, scratch_operands = 0 : i64, tpu.core_type = #tpu.core_type<tc>, window_params = [{transform_indices = @transform_0, window_bounds = array<i64: 16, 1024>}, {pipeline_mode = #tpu.pipeline_mode<synchronous>, transform_indices = @transform_1, window_bounds = array<i64: 1024, 512>}, {pipeline_mode = #tpu.pipeline_mode<synchronous>, transform_indices = @transform_2, window_bounds = array<i64: 1, 512>}, {pipeline_mode = #tpu.pipeline_mode<synchronous>, transform_indices = @transform_3, window_bounds = array<i64: 512, 256>}, {pipeline_mode = #tpu.pipeline_mode<synchronous>, transform_indices = @transform_4, window_bounds = array<i64: 1, 256>}, {pipeline_mode = #tpu.pipeline_mode<synchronous>, transform_indices = @transform_5, window_bounds = array<i64: 256, 128>}, {pipeline_mode = #tpu.pipeline_mode<synchronous>, transform_indices = @transform_6, window_bounds = array<i64: 1, 128>}, {transform_indices = @transform_7, window_bounds = array<i64: 16, 128>}]} {
    %c0 = arith.constant 0 : index
    %c0_0 = arith.constant 0 : index
    %0 = vector.load %arg1[%c0, %c0_0] : memref<16x1024xbf16, #tpu.memory_space<vmem>>, vector<16x1024xbf16>
    %c0_1 = arith.constant 0 : index
    %c0_2 = arith.constant 0 : index
    %1 = vector.load %arg2[%c0_1, %c0_2] : memref<1024x512xbf16, #tpu.memory_space<vmem>>, vector<1024x512xbf16>
    %cst = arith.constant dense<0.000000e+00> : vector<16x512xf32>
    %2 = tpu.matmul %0, %1, %cst {dimension_numbers = #tpu.dot_dimension_numbers<[1], [0], [0], [1], [0, 0, 1, 1], [], []>} : vector<16x1024xbf16>, vector<1024x512xbf16>, vector<16x512xf32> -> vector<16x512xf32>
    %c0_3 = arith.constant 0 : index
    %c0_4 = arith.constant 0 : index
    %3 = vector.load %arg3[%c0_3, %c0_4] : memref<1x512xf32, #tpu.memory_space<vmem>>, vector<1x512xf32>
    %4 = vector.broadcast %3 : vector<1x512xf32> to vector<16x512xf32>
    %5 = arith.addf %2, %4 : vector<16x512xf32>
    %cst_5 = arith.constant 0.000000e+00 : f32
    %6 = vector.broadcast %cst_5 : f32 to vector<16x512xf32>
    %7 = arith.maximumf %5, %6 : vector<16x512xf32>
    %8 = arith.truncf %7 : vector<16x512xf32> to vector<16x512xbf16>
    %c0_6 = arith.constant 0 : index
    %c0_7 = arith.constant 0 : index
    %9 = vector.load %arg4[%c0_6, %c0_7] : memref<512x256xbf16, #tpu.memory_space<vmem>>, vector<512x256xbf16>
    %cst_8 = arith.constant dense<0.000000e+00> : vector<16x256xf32>
    %10 = tpu.matmul %8, %9, %cst_8 {dimension_numbers = #tpu.dot_dimension_numbers<[1], [0], [0], [1], [0, 0, 1, 1], [], []>} : vector<16x512xbf16>, vector<512x256xbf16>, vector<16x256xf32> -> vector<16x256xf32>
    %c0_9 = arith.constant 0 : index
    %c0_10 = arith.constant 0 : index
    %11 = vector.load %arg5[%c0_9, %c0_10] : memref<1x256xf32, #tpu.memory_space<vmem>>, vector<1x256xf32>
    %12 = vector.broadcast %11 : vector<1x256xf32> to vector<16x256xf32>
    %13 = arith.addf %10, %12 : vector<16x256xf32>
    %cst_11 = arith.constant 0.000000e+00 : f32
    %14 = vector.broadcast %cst_11 : f32 to vector<16x256xf32>
    %15 = arith.maximumf %13, %14 : vector<16x256xf32>
    %16 = arith.truncf %15 : vector<16x256xf32> to vector<16x256xbf16>
    %c0_12 = arith.constant 0 : index
    %c0_13 = arith.constant 0 : index
    %17 = vector.load %arg6[%c0_12, %c0_13] : memref<256x128xbf16, #tpu.memory_space<vmem>>, vector<256x128xbf16>
    %cst_14 = arith.constant dense<0.000000e+00> : vector<16x128xf32>
    %18 = tpu.matmul %16, %17, %cst_14 {dimension_numbers = #tpu.dot_dimension_numbers<[1], [0], [0], [1], [0, 0, 1, 1], [], []>} : vector<16x256xbf16>, vector<256x128xbf16>, vector<16x128xf32> -> vector<16x128xf32>
    %c0_15 = arith.constant 0 : index
    %c0_16 = arith.constant 0 : index
    %19 = vector.load %arg7[%c0_15, %c0_16] : memref<1x128xf32, #tpu.memory_space<vmem>>, vector<1x128xf32>
    %20 = vector.broadcast %19 : vector<1x128xf32> to vector<16x128xf32>
    %21 = arith.addf %18, %20 : vector<16x128xf32>
    %22 = math.tanh %21 : vector<16x128xf32>
    %c0_17 = arith.constant 0 : index
    %c0_18 = arith.constant 0 : index
    %23 = vector.load %arg8[%c0_17, %c0_18] : memref<16x128xf32, #tpu.memory_space<vmem>>, vector<16x128xf32>
    tpu.vector_store %arg8[%c0_17, %c0_18], %22 {strides = array<i32>} : memref<16x128xf32, #tpu.memory_space<vmem>>, vector<16x128xf32>,
    return
  }
  func.func @transform_0(%arg0: i32) -> (i32, i32) {
    %c0_i32 = arith.constant 0 : i32
    %c0_i32_0 = arith.constant 0 : i32
    return %arg0, %c0_i32 : i32, i32
  }
  func.func @transform_1(%arg0: i32) -> (i32, i32) {
    %c0_i32 = arith.constant 0 : i32
    %c0_i32_0 = arith.constant 0 : i32
    %c0_i32_1 = arith.constant 0 : i32
    return %c0_i32, %c0_i32_0 : i32, i32
  }
  func.func @transform_2(%arg0: i32) -> (i32, i32) {
    %c0_i32 = arith.constant 0 : i32
    %c0_i32_0 = arith.constant 0 : i32
    %c0_i32_1 = arith.constant 0 : i32
    return %c0_i32, %c0_i32_0 : i32, i32
  }
  func.func @transform_3(%arg0: i32) -> (i32, i32) {
    %c0_i32 = arith.constant 0 : i32
    %c0_i32_0 = arith.constant 0 : i32
    %c0_i32_1 = arith.constant 0 : i32
    return %c0_i32, %c0_i32_0 : i32, i32
  }
  func.func @transform_4(%arg0: i32) -> (i32, i32) {
    %c0_i32 = arith.constant 0 : i32
    %c0_i32_0 = arith.constant 0 : i32
    %c0_i32_1 = arith.constant 0 : i32
    return %c0_i32, %c0_i32_0 : i32, i32
  }
  func.func @transform_5(%arg0: i32) -> (i32, i32) {
    %c0_i32 = arith.constant 0 : i32
    %c0_i32_0 = arith.constant 0 : i32
    %c0_i32_1 = arith.constant 0 : i32
    return %c0_i32, %c0_i32_0 : i32, i32
  }
  func.func @transform_6(%arg0: i32) -> (i32, i32) {
    %c0_i32 = arith.constant 0 : i32
    %c0_i32_0 = arith.constant 0 : i32
    %c0_i32_1 = arith.constant 0 : i32
    return %c0_i32, %c0_i32_0 : i32, i32
  }
  func.func @transform_7(%arg0: i32) -> (i32, i32) {
    %c0_i32 = arith.constant 0 : i32
    %c0_i32_0 = arith.constant 0 : i32
    return %arg0, %c0_i32 : i32, i32
  }
}

</mosaic_0001>

<llo_original>
// kernel: tpu_custom_call.1
$region0: #{tpu_custom_call.1}
  #allocation0 [shape = 'u32[]', space=smem, size = 0x4, offset = 0x4, fixed_abs, tag = 'smem constant byte address 0x4 - core index']
  #allocation1 [shape = 'u32[144,128]{1,0:T(1,128)}', space=vmem, size = 0x12000, scoped, tag = 'internal scratch']
  %s0 = inlined_call_operand.hbm [shape: bf16[16,1024], index: 0, kind: input, shape index: {}]
  %s1 = inlined_call_operand.hbm [shape: bf16[1024,512], index: 1, kind: input, shape index: {}]
  %s2 = inlined_call_operand.hbm [shape: f32[1,512], index: 2, kind: input, shape index: {}]
  %s3 = inlined_call_operand.hbm [shape: bf16[512,256], index: 3, kind: input, shape index: {}]
  %s4 = inlined_call_operand.vmem [shape: f32[1,256], index: 4, kind: input, shape index: {}]
  %s5 = inlined_call_operand.hbm [shape: bf16[256,128], index: 5, kind: input, shape index: {}]
  %s6 = inlined_call_operand.vmem [shape: f32[1,128], index: 6, kind: input, shape index: {}]
  %s7 = inlined_call_operand.hbm [shape: f32[16,128], index: 7, kind: output, shape index: {}]
  %s8 = sld [smem:[#allocation0]]
  $region58: #{tpu_custom_call.1} parent=0
    _
  %s10 = ssub.s32 1, %s8
  %s11 = scalar_select 0, %s10, %s8
  $region1: #{tpu_custom_call.1} parent=0
    #allocation2 [shape = 'u8[32768]{0}', space=vmem, size = 0x8000, scoped, tag = 'input window, operand 0, single buffered']
    #allocation3 [shape = 's32[1]{0}', space=sflag, size = 0x4, scoped, tag = 'scoped memory for tpu_custom_call.1']
    #allocation4 [shape = 's32[1]{0}', space=sflag, size = 0x4, scoped, tag = 'scoped memory for tpu_custom_call.1']
    #allocation5 [shape = 'u8[1048576]{0}', space=vmem, size = 0x100000, scoped, tag = 'input window, operand 1, single buffered']
    #allocation6 [shape = 's32[1]{0}', space=sflag, size = 0x4, scoped, tag = 'scoped memory for tpu_custom_call.1']
    #allocation7 [shape = 'u8[2048]{0}', space=vmem, size = 0x800, scoped, tag = 'input window, operand 2, single buffered']
    #allocation8 [shape = 'u8[262144]{0}', space=vmem, size = 0x40000, scoped, tag = 'input window, operand 3, single buffered']
    #allocation9 [shape = 's32[1]{0}', space=sflag, size = 0x4, scoped, tag = 'scoped memory for tpu_custom_call.1']
    #allocation10 [shape = 'u8[65536]{0}', space=vmem, size = 0x10000, scoped, tag = 'input window, operand 5, single buffered']
    #allocation11 [shape = 'u8[8192]{0}', space=vmem, size = 0x2000, scoped, tag = 'output window, operand 0, single buffered']
    %12 = vsyncpa [#allocation3], 0
    %13 = vsyncpa [#allocation6], 0
    %14 = vsyncpa [#allocation9], 0
    %15 = vsyncpa [#allocation4], 0
    // Predicated region
    $region2: #{tpu_custom_call.1} parent=1 // pred_check
      _
    $region3: #{tpu_custom_call.1} parent=1 // pred_check_branch
      %17 = sbr.rel (0) target = $region5
    $region4: #{tpu_custom_call.1} parent=1 // pred_region
      %s19 = ssub.s32 1024, 1024
      %20 = vsyncadd [#allocation3], %s19
      %s21 = sshll.u32 [#allocation2], 4
      %s22 = int_to_ptr.vmem [resolvable:$true] %s21
      %27 = dma.hbm_to_vmem [thread:$0]  %s0, 1024, %s22, [#allocation3], 512, 512, 32
    $region5: #{tpu_custom_call.1} parent=1 // pred_fallthru
      _
    // Predicated region
    $region6: #{tpu_custom_call.1} parent=1 // pred_check
      _
    $region7: #{tpu_custom_call.1} parent=1 // pred_check_branch
      %29 = sbr.rel (0) target = $region9
    $region8: #{tpu_custom_call.1} parent=1 // pred_region
      %s31 = ssub.s32 32768, 32768
      %32 = vsyncadd [#allocation6], %s31
      %s33 = sshll.u32 [#allocation5], 4
      %s34 = int_to_ptr.vmem [resolvable:$true] %s33
      %39 = dma.hbm_to_vmem [thread:$0]  %s1, 32768, %s34, [#allocation6], 256, 256, 16
    $region9: #{tpu_custom_call.1} parent=1 // pred_fallthru
      _
    // Predicated region
    $region10: #{tpu_custom_call.1} parent=1 // pred_check
      _
    $region11: #{tpu_custom_call.1} parent=1 // pred_check_branch
      %41 = sbr.rel (0) target = $region13
    $region12: #{tpu_custom_call.1} parent=1 // pred_region
      %s43 = ssub.s32 64, 64
      %44 = vsyncadd [#allocation6], %s43
      %s46 = sshll.u32 [#allocation7], 4
      %s47 = int_to_ptr.vmem [resolvable:$true] %s46
      %49 = dma.hbm_to_vmem [thread:$0]  %s2, 64, %s47, [#allocation6]
    $region13: #{tpu_custom_call.1} parent=1 // pred_fallthru
      _
    // Predicated region
    $region14: #{tpu_custom_call.1} parent=1 // pred_check
      _
    $region15: #{tpu_custom_call.1} parent=1 // pred_check_branch
      %51 = sbr.rel (0) target = $region17
    $region16: #{tpu_custom_call.1} parent=1 // pred_region
      %s53 = ssub.s32 8192, 8192
      %54 = vsyncadd [#allocation9], %s53
      %s55 = sshll.u32 [#allocation8], 4
      %s56 = int_to_ptr.vmem [resolvable:$true] %s55
      %61 = dma.hbm_to_vmem [thread:$0]  %s3, 8192, %s56, [#allocation9], 128, 128, 8
    $region17: #{tpu_custom_call.1} parent=1 // pred_fallthru
      _
    // Predicated region
    $region18: #{tpu_custom_call.1} parent=1 // pred_check
      _
    $region19: #{tpu_custom_call.1} parent=1 // pred_check_branch
      %63 = sbr.rel (0) target = $region21
    $region20: #{tpu_custom_call.1} parent=1 // pred_region
      _
    $region21: #{tpu_custom_call.1} parent=1 // pred_fallthru
      _
    // Predicated region
    $region22: #{tpu_custom_call.1} parent=1 // pred_check
      _
    $region23: #{tpu_custom_call.1} parent=1 // pred_check_branch
      %65 = sbr.rel (0) target = $region25
    $region24: #{tpu_custom_call.1} parent=1 // pred_region
      %s67 = ssub.s32 2048, 2048
      %68 = vsyncadd [#allocation9], %s67
      %s69 = sshll.u32 [#allocation10], 4
      %s70 = int_to_ptr.vmem [resolvable:$true] %s69
      %75 = dma.hbm_to_vmem [thread:$0]  %s5, 2048, %s70, [#allocation9], 64, 64, 4
    $region25: #{tpu_custom_call.1} parent=1 // pred_fallthru
      _
    // Predicated region
    $region26: #{tpu_custom_call.1} parent=1 // pred_check
      _
    $region27: #{tpu_custom_call.1} parent=1 // pred_check_branch
      %77 = sbr.rel (0) target = $region29
    $region28: #{tpu_custom_call.1} parent=1 // pred_region
      _
    $region29: #{tpu_custom_call.1} parent=1 // pred_fallthru
      _
    // Predicated region
    $region30: #{tpu_custom_call.1} parent=1 // pred_check
      _
    $region31: #{tpu_custom_call.1} parent=1 // pred_check_branch
      %79 = sbr.rel (0) target = $region33
    $region32: #{tpu_custom_call.1} parent=1 // pred_region
      %80 = dma.done [#allocation3], 1024
    $region33: #{tpu_custom_call.1} parent=1 // pred_fallthru
      _
    // Predicated region
    $region34: #{tpu_custom_call.1} parent=1 // pred_check
      _
    $region35: #{tpu_custom_call.1} parent=1 // pred_check_branch
      %82 = sbr.rel (0) target = $region37
    $region36: #{tpu_custom_call.1} parent=1 // pred_region
      %83 = dma.done [#allocation6], 32768
    $region37: #{tpu_custom_call.1} parent=1 // pred_fallthru
      _
    // Predicated region
    $region38: #{tpu_custom_call.1} parent=1 // pred_check
      _
    $region39: #{tpu_custom_call.1} parent=1 // pred_check_branch
      %85 = sbr.rel (0) target = $region41
    $region40: #{tpu_custom_call.1} parent=1 // pred_region
      %86 = dma.done [#allocation6], 64
    $region41: #{tpu_custom_call.1} parent=1 // pred_fallthru
      _
    // Predicated region
    $region42: #{tpu_custom_call.1} parent=1 // pred_check
      _
    $region43: #{tpu_custom_call.1} parent=1 // pred_check_branch
      %88 = sbr.rel (0) target = $region45
    $region44: #{tpu_custom_call.1} parent=1 // pred_region
      %89 = dma.done [#allocation9], 8192
    $region45: #{tpu_custom_call.1} parent=1 // pred_fallthru
      _
    // Predicated region
    $region46: #{tpu_custom_call.1} parent=1 // pred_check
      _
    $region47: #{tpu_custom_call.1} parent=1 // pred_check_branch
      %91 = sbr.rel (0) target = $region49
    $region48: #{tpu_custom_call.1} parent=1 // pred_region
      %92 = dma.done [#allocation9], 2048
    $region49: #{tpu_custom_call.1} parent=1 // pred_fallthru
      _
    %v94 = vld [vmem:[#allocation2] sm:$0xff]
    %v95 = vld [vmem:[#allocation2 + $0x8] sm:$0xff]
    %v96 = vld [vmem:[#allocation2 + $0x10] sm:$0xff]
    %v97 = vld [vmem:[#allocation2 + $0x18] sm:$0xff]
    %v98 = vld [vmem:[#allocation2 + $0x20] sm:$0xff]
    %v99 = vld [vmem:[#allocation2 + $0x28] sm:$0xff]
    %v100 = vld [vmem:[#allocation2 + $0x30] sm:$0xff]
    %v101 = vld [vmem:[#allocation2 + $0x38] sm:$0xff]
    %v102 = vld [vmem:[#allocation5] sm:$0xff]
    %v103 = vld [vmem:[#allocation5 + $0x8] sm:$0xff]
    %v104 = vld [vmem:[#allocation5 + $0x10] sm:$0xff]
    %v105 = vld [vmem:[#allocation5 + $0x18] sm:$0xff]
    %v106 = vld [vmem:[#allocation5 + $0x20] sm:$0xff]
    %v107 = vld [vmem:[#allocation5 + $0x28] sm:$0xff]
    %v108 = vld [vmem:[#allocation5 + $0x30] sm:$0xff]
    %v109 = vld [vmem:[#allocation5 + $0x38] sm:$0xff]
    %v110 = vld [vmem:[#allocation5 + $0x40] sm:$0xff]
    %v111 = vld [vmem:[#allocation5 + $0x48] sm:$0xff]
    %v112 = vld [vmem:[#allocation5 + $0x50] sm:$0xff]
    %v113 = vld [vmem:[#allocation5 + $0x58] sm:$0xff]
    %v114 = vld [vmem:[#allocation5 + $0x60] sm:$0xff]
    %v115 = vld [vmem:[#allocation5 + $0x68] sm:$0xff]
    %v116 = vld [vmem:[#allocation5 + $0x70] sm:$0xff]
    %v117 = vld [vmem:[#allocation5 + $0x78] sm:$0xff]
    %v118 = vld [vmem:[#allocation5 + $0x80] sm:$0xff]
    %v119 = vld [vmem:[#allocation5 + $0x88] sm:$0xff]
    %v120 = vld [vmem:[#allocation5 + $0x90] sm:$0xff]
    %v121 = vld [vmem:[#allocation5 + $0x98] sm:$0xff]
    %v122 = vld [vmem:[#allocation5 + $0xa0] sm:$0xff]
    %v123 = vld [vmem:[#allocation5 + $0xa8] sm:$0xff]
    %v124 = vld [vmem:[#allocation5 + $0xb0] sm:$0xff]
    %v125 = vld [vmem:[#allocation5 + $0xb8] sm:$0xff]
    %v126 = vld [vmem:[#allocation5 + $0xc0] sm:$0xff]
    %v127 = vld [vmem:[#allocation5 + $0xc8] sm:$0xff]
    %v128 = vld [vmem:[#allocation5 + $0xd0] sm:$0xff]
    %v129 = vld [vmem:[#allocation5 + $0xd8] sm:$0xff]
    %v130 = vld [vmem:[#allocation5 + $0xe0] sm:$0xff]
    %v131 = vld [vmem:[#allocation5 + $0xe8] sm:$0xff]
    %v132 = vld [vmem:[#allocation5 + $0xf0] sm:$0xff]
    %v133 = vld [vmem:[#allocation5 + $0xf8] sm:$0xff]
    %v134 = vld [vmem:[#allocation5 + $0x100] sm:$0xff]
    %v135 = vld [vmem:[#allocation5 + $0x108] sm:$0xff]
    %v136 = vld [vmem:[#allocation5 + $0x110] sm:$0xff]
    %v137 = vld [vmem:[#allocation5 + $0x118] sm:$0xff]
    %v138 = vld [vmem:[#allocation5 + $0x120] sm:$0xff]
    %v139 = vld [vmem:[#allocation5 + $0x128] sm:$0xff]
    %v140 = vld [vmem:[#allocation5 + $0x130] sm:$0xff]
    %v141 = vld [vmem:[#allocation5 + $0x138] sm:$0xff]
    %v142 = vld [vmem:[#allocation5 + $0x140] sm:$0xff]
    %v143 = vld [vmem:[#allocation5 + $0x148] sm:$0xff]
    %v144 = vld [vmem:[#allocation5 + $0x150] sm:$0xff]
    %v145 = vld [vmem:[#allocation5 + $0x158] sm:$0xff]
    %v146 = vld [vmem:[#allocation5 + $0x160] sm:$0xff]
    %v147 = vld [vmem:[#allocation5 + $0x168] sm:$0xff]
    %v148 = vld [vmem:[#allocation5 + $0x170] sm:$0xff]
    %v149 = vld [vmem:[#allocation5 + $0x178] sm:$0xff]
    %v150 = vld [vmem:[#allocation5 + $0x180] sm:$0xff]
    %v151 = vld [vmem:[#allocation5 + $0x188] sm:$0xff]
    %v152 = vld [vmem:[#allocation5 + $0x190] sm:$0xff]
    %v153 = vld [vmem:[#allocation5 + $0x198] sm:$0xff]
    %v154 = vld [vmem:[#allocation5 + $0x1a0] sm:$0xff]
    %v155 = vld [vmem:[#allocation5 + $0x1a8] sm:$0xff]
    %v156 = vld [vmem:[#allocation5 + $0x1b0] sm:$0xff]
    %v157 = vld [vmem:[#allocation5 + $0x1b8] sm:$0xff]
    %v158 = vld [vmem:[#allocation5 + $0x1c0] sm:$0xff]
    %v159 = vld [vmem:[#allocation5 + $0x1c8] sm:$0xff]
    %v160 = vld [vmem:[#allocation5 + $0x1d0] sm:$0xff]
    %v161 = vld [vmem:[#allocation5 + $0x1d8] sm:$0xff]
    %v162 = vld [vmem:[#allocation5 + $0x1e0] sm:$0xff]
    %v163 = vld [vmem:[#allocation5 + $0x1e8] sm:$0xff]
    %v164 = vld [vmem:[#allocation5 + $0x1f0] sm:$0xff]
    %v165 = vld [vmem:[#allocation5 + $0x1f8] sm:$0xff]
    %v166 = vld [vmem:[#allocation5 + $0x200] sm:$0xff]
    %v167 = vld [vmem:[#allocation5 + $0x208] sm:$0xff]
    %v168 = vld [vmem:[#allocation5 + $0x210] sm:$0xff]
    %v169 = vld [vmem:[#allocation5 + $0x218] sm:$0xff]
    %v170 = vld [vmem:[#allocation5 + $0x220] sm:$0xff]
    %v171 = vld [vmem:[#allocation5 + $0x228] sm:$0xff]
    %v172 = vld [vmem:[#allocation5 + $0x230] sm:$0xff]
    %v173 = vld [vmem:[#allocation5 + $0x238] sm:$0xff]
    %v174 = vld [vmem:[#allocation5 + $0x240] sm:$0xff]
    %v175 = vld [vmem:[#allocation5 + $0x248] sm:$0xff]
    %v176 = vld [vmem:[#allocation5 + $0x250] sm:$0xff]
    %v177 = vld [vmem:[#allocation5 + $0x258] sm:$0xff]
    %v178 = vld [vmem:[#allocation5 + $0x260] sm:$0xff]
    %v179 = vld [vmem:[#allocation5 + $0x268] sm:$0xff]
    %v180 = vld [vmem:[#allocation5 + $0x270] sm:$0xff]
    %v181 = vld [vmem:[#allocation5 + $0x278] sm:$0xff]
    %v182 = vld [vmem:[#allocation5 + $0x280] sm:$0xff]
    %v183 = vld [vmem:[#allocation5 + $0x288] sm:$0xff]
    %v184 = vld [vmem:[#allocation5 + $0x290] sm:$0xff]
    %v185 = vld [vmem:[#allocation5 + $0x298] sm:$0xff]
    %v186 = vld [vmem:[#allocation5 + $0x2a0] sm:$0xff]
    %v187 = vld [vmem:[#allocation5 + $0x2a8] sm:$0xff]
    %v188 = vld [vmem:[#allocation5 + $0x2b0] sm:$0xff]
    %v189 = vld [vmem:[#allocation5 + $0x2b8] sm:$0xff]
    %v190 = vld [vmem:[#allocation5 + $0x2c0] sm:$0xff]
    %v191 = vld [vmem:[#allocation5 + $0x2c8] sm:$0xff]
    %v192 = vld [vmem:[#allocation5 + $0x2d0] sm:$0xff]
    %v193 = vld [vmem:[#allocation5 + $0x2d8] sm:$0xff]
    %v194 = vld [vmem:[#allocation5 + $0x2e0] sm:$0xff]
    %v195 = vld [vmem:[#allocation5 + $0x2e8] sm:$0xff]
    %v196 = vld [vmem:[#allocation5 + $0x2f0] sm:$0xff]
    %v197 = vld [vmem:[#allocation5 + $0x2f8] sm:$0xff]
    %v198 = vld [vmem:[#allocation5 + $0x300] sm:$0xff]
    %v199 = vld [vmem:[#allocation5 + $0x308] sm:$0xff]
    %v200 = vld [vmem:[#allocation5 + $0x310] sm:$0xff]
    %v201 = vld [vmem:[#allocation5 + $0x318] sm:$0xff]
    %v202 = vld [vmem:[#allocation5 + $0x320] sm:$0xff]
    %v203 = vld [vmem:[#allocation5 + $0x328] sm:$0xff]
    %v204 = vld [vmem:[#allocation5 + $0x330] sm:$0xff]
    %v205 = vld [vmem:[#allocation5 + $0x338] sm:$0xff]
    %v206 = vld [vmem:[#allocation5 + $0x340] sm:$0xff]
    %v207 = vld [vmem:[#allocation5 + $0x348] sm:$0xff]
    %v208 = vld [vmem:[#allocation5 + $0x350] sm:$0xff]
    %v209 = vld [vmem:[#allocation5 + $0x358] sm:$0xff]
    %v210 = vld [vmem:[#allocation5 + $0x360] sm:$0xff]
    %v211 = vld [vmem:[#allocation5 + $0x368] sm:$0xff]
    %v212 = vld [vmem:[#allocation5 + $0x370] sm:$0xff]
    %v213 = vld [vmem:[#allocation5 + $0x378] sm:$0xff]
    %v214 = vld [vmem:[#allocation5 + $0x380] sm:$0xff]
    %v215 = vld [vmem:[#allocation5 + $0x388] sm:$0xff]
    %v216 = vld [vmem:[#allocation5 + $0x390] sm:$0xff]
    %v217 = vld [vmem:[#allocation5 + $0x398] sm:$0xff]
    %v218 = vld [vmem:[#allocation5 + $0x3a0] sm:$0xff]
    %v219 = vld [vmem:[#allocation5 + $0x3a8] sm:$0xff]
    %v220 = vld [vmem:[#allocation5 + $0x3b0] sm:$0xff]
    %v221 = vld [vmem:[#allocation5 + $0x3b8] sm:$0xff]
    %v222 = vld [vmem:[#allocation5 + $0x3c0] sm:$0xff]
    %v223 = vld [vmem:[#allocation5 + $0x3c8] sm:$0xff]
    %v224 = vld [vmem:[#allocation5 + $0x3d0] sm:$0xff]
    %v225 = vld [vmem:[#allocation5 + $0x3d8] sm:$0xff]
    %v226 = vld [vmem:[#allocation5 + $0x3e0] sm:$0xff]
    %v227 = vld [vmem:[#allocation5 + $0x3e8] sm:$0xff]
    %v228 = vld [vmem:[#allocation5 + $0x3f0] sm:$0xff]
    %v229 = vld [vmem:[#allocation5 + $0x3f8] sm:$0xff]
    %v230 = vld [vmem:[#allocation5 + $0x400] sm:$0xff]
    %v231 = vld [vmem:[#allocation5 + $0x408] sm:$0xff]
    %v232 = vld [vmem:[#allocation5 + $0x410] sm:$0xff]
    %v233 = vld [vmem:[#allocation5 + $0x418] sm:$0xff]
    %v234 = vld [vmem:[#allocation5 + $0x420] sm:$0xff]
    %v235 = vld [vmem:[#allocation5 + $0x428] sm:$0xff]
    %v236 = vld [vmem:[#allocation5 + $0x430] sm:$0xff]
    %v237 = vld [vmem:[#allocation5 + $0x438] sm:$0xff]
    %v238 = vld [vmem:[#allocation5 + $0x440] sm:$0xff]
    %v239 = vld [vmem:[#allocation5 + $0x448] sm:$0xff]
    %v240 = vld [vmem:[#allocation5 + $0x450] sm:$0xff]
    %v241 = vld [vmem:[#allocation5 + $0x458] sm:$0xff]
    %v242 = vld [vmem:[#allocation5 + $0x460] sm:$0xff]
    %v243 = vld [vmem:[#allocation5 + $0x468] sm:$0xff]
    %v244 = vld [vmem:[#allocation5 + $0x470] sm:$0xff]
    %v245 = vld [vmem:[#allocation5 + $0x478] sm:$0xff]
    %v246 = vld [vmem:[#allocation5 + $0x480] sm:$0xff]
    %v247 = vld [vmem:[#allocation5 + $0x488] sm:$0xff]
    %v248 = vld [vmem:[#allocation5 + $0x490] sm:$0xff]
    %v249 = vld [vmem:[#allocation5 + $0x498] sm:$0xff]
    %v250 = vld [vmem:[#allocation5 + $0x4a0] sm:$0xff]
    %v251 = vld [vmem:[#allocation5 + $0x4a8] sm:$0xff]
    %v252 = vld [vmem:[#allocation5 + $0x4b0] sm:$0xff]
    %v253 = vld [vmem:[#allocation5 + $0x4b8] sm:$0xff]
    %v254 = vld [vmem:[#allocation5 + $0x4c0] sm:$0xff]
    %v255 = vld [vmem:[#allocation5 + $0x4c8] sm:$0xff]
    %v256 = vld [vmem:[#allocation5 + $0x4d0] sm:$0xff]
    %v257 = vld [vmem:[#allocation5 + $0x4d8] sm:$0xff]
    %v258 = vld [vmem:[#allocation5 + $0x4e0] sm:$0xff]
    %v259 = vld [vmem:[#allocation5 + $0x4e8] sm:$0xff]
    %v260 = vld [vmem:[#allocation5 + $0x4f0] sm:$0xff]
    %v261 = vld [vmem:[#allocation5 + $0x4f8] sm:$0xff]
    %v262 = vld [vmem:[#allocation5 + $0x500] sm:$0xff]
    %v263 = vld [vmem:[#allocation5 + $0x508] sm:$0xff]
    %v264 = vld [vmem:[#allocation5 + $0x510] sm:$0xff]
    %v265 = vld [vmem:[#allocation5 + $0x518] sm:$0xff]
    %v266 = vld [vmem:[#allocation5 + $0x520] sm:$0xff]
    %v267 = vld [vmem:[#allocation5 + $0x528] sm:$0xff]
    %v268 = vld [vmem:[#allocation5 + $0x530] sm:$0xff]
    %v269 = vld [vmem:[#allocation5 + $0x538] sm:$0xff]
    %v270 = vld [vmem:[#allocation5 + $0x540] sm:$0xff]
    %v271 = vld [vmem:[#allocation5 + $0x548] sm:$0xff]
    %v272 = vld [vmem:[#allocation5 + $0x550] sm:$0xff]
    %v273 = vld [vmem:[#allocation5 + $0x558] sm:$0xff]
    %v274 = vld [vmem:[#allocation5 + $0x560] sm:$0xff]
    %v275 = vld [vmem:[#allocation5 + $0x568] sm:$0xff]
    %v276 = vld [vmem:[#allocation5 + $0x570] sm:$0xff]
    %v277 = vld [vmem:[#allocation5 + $0x578] sm:$0xff]
    %v278 = vld [vmem:[#allocation5 + $0x580] sm:$0xff]
    %v279 = vld [vmem:[#allocation5 + $0x588] sm:$0xff]
    %v280 = vld [vmem:[#allocation5 + $0x590] sm:$0xff]
    %v281 = vld [vmem:[#allocation5 + $0x598] sm:$0xff]
    %v282 = vld [vmem:[#allocation5 + $0x5a0] sm:$0xff]
    %v283 = vld [vmem:[#allocation5 + $0x5a8] sm:$0xff]
    %v284 = vld [vmem:[#allocation5 + $0x5b0] sm:$0xff]
    %v285 = vld [vmem:[#allocation5 + $0x5b8] sm:$0xff]
    %v286 = vld [vmem:[#allocation5 + $0x5c0] sm:$0xff]
    %v287 = vld [vmem:[#allocation5 + $0x5c8] sm:$0xff]
    %v288 = vld [vmem:[#allocation5 + $0x5d0] sm:$0xff]
    %v289 = vld [vmem:[#allocation5 + $0x5d8] sm:$0xff]
    %v290 = vld [vmem:[#allocation5 + $0x5e0] sm:$0xff]
    %v291 = vld [vmem:[#allocation5 + $0x5e8] sm:$0xff]
    %v292 = vld [vmem:[#allocation5 + $0x5f0] sm:$0xff]
    %v293 = vld [vmem:[#allocation5 + $0x5f8] sm:$0xff]
    %v294 = vld [vmem:[#allocation5 + $0x600] sm:$0xff]
    %v295 = vld [vmem:[#allocation5 + $0x608] sm:$0xff]
    %v296 = vld [vmem:[#allocation5 + $0x610] sm:$0xff]
    %v297 = vld [vmem:[#allocation5 + $0x618] sm:$0xff]
    %v298 = vld [vmem:[#allocation5 + $0x620] sm:$0xff]
    %v299 = vld [vmem:[#allocation5 + $0x628] sm:$0xff]
    %v300 = vld [vmem:[#allocation5 + $0x630] sm:$0xff]
    %v301 = vld [vmem:[#allocation5 + $0x638] sm:$0xff]
    %v302 = vld [vmem:[#allocation5 + $0x640] sm:$0xff]
    %v303 = vld [vmem:[#allocation5 + $0x648] sm:$0xff]
    %v304 = vld [vmem:[#allocation5 + $0x650] sm:$0xff]
    %v305 = vld [vmem:[#allocation5 + $0x658] sm:$0xff]
    %v306 = vld [vmem:[#allocation5 + $0x660] sm:$0xff]
    %v307 = vld [vmem:[#allocation5 + $0x668] sm:$0xff]
    %v308 = vld [vmem:[#allocation5 + $0x670] sm:$0xff]
    %v309 = vld [vmem:[#allocation5 + $0x678] sm:$0xff]
    %v310 = vld [vmem:[#allocation5 + $0x680] sm:$0xff]
    %v311 = vld [vmem:[#allocation5 + $0x688] sm:$0xff]
    %v312 = vld [vmem:[#allocation5 + $0x690] sm:$0xff]
    %v313 = vld [vmem:[#allocation5 + $0x698] sm:$0xff]
    %v314 = vld [vmem:[#allocation5 + $0x6a0] sm:$0xff]
    %v315 = vld [vmem:[#allocation5 + $0x6a8] sm:$0xff]
    %v316 = vld [vmem:[#allocation5 + $0x6b0] sm:$0xff]
    %v317 = vld [vmem:[#allocation5 + $0x6b8] sm:$0xff]
    %v318 = vld [vmem:[#allocation5 + $0x6c0] sm:$0xff]
    %v319 = vld [vmem:[#allocation5 + $0x6c8] sm:$0xff]
    %v320 = vld [vmem:[#allocation5 + $0x6d0] sm:$0xff]
    %v321 = vld [vmem:[#allocation5 + $0x6d8] sm:$0xff]
    %v322 = vld [vmem:[#allocation5 + $0x6e0] sm:$0xff]
    %v323 = vld [vmem:[#allocation5 + $0x6e8] sm:$0xff]
    %v324 = vld [vmem:[#allocation5 + $0x6f0] sm:$0xff]
    %v325 = vld [vmem:[#allocation5 + $0x6f8] sm:$0xff]
    %v326 = vld [vmem:[#allocation5 + $0x700] sm:$0xff]
    %v327 = vld [vmem:[#allocation5 + $0x708] sm:$0xff]
    %v328 = vld [vmem:[#allocation5 + $0x710] sm:$0xff]
    %v329 = vld [vmem:[#allocation5 + $0x718] sm:$0xff]
    %v330 = vld [vmem:[#allocation5 + $0x720] sm:$0xff]
    %v331 = vld [vmem:[#allocation5 + $0x728] sm:$0xff]
    %v332 = vld [vmem:[#allocation5 + $0x730] sm:$0xff]
    %v333 = vld [vmem:[#allocation5 + $0x738] sm:$0xff]
    %v334 = vld [vmem:[#allocation5 + $0x740] sm:$0xff]
    %v335 = vld [vmem:[#allocation5 + $0x748] sm:$0xff]
    %v336 = vld [vmem:[#allocation5 + $0x750] sm:$0xff]
    %v337 = vld [vmem:[#allocation5 + $0x758] sm:$0xff]
    %v338 = vld [vmem:[#allocation5 + $0x760] sm:$0xff]
    %v339 = vld [vmem:[#allocation5 + $0x768] sm:$0xff]
    %v340 = vld [vmem:[#allocation5 + $0x770] sm:$0xff]
    %v341 = vld [vmem:[#allocation5 + $0x778] sm:$0xff]
    %v342 = vld [vmem:[#allocation5 + $0x780] sm:$0xff]
    %v343 = vld [vmem:[#allocation5 + $0x788] sm:$0xff]
    %v344 = vld [vmem:[#allocation5 + $0x790] sm:$0xff]
    %v345 = vld [vmem:[#allocation5 + $0x798] sm:$0xff]
    %v346 = vld [vmem:[#allocation5 + $0x7a0] sm:$0xff]
    %v347 = vld [vmem:[#allocation5 + $0x7a8] sm:$0xff]
    %v348 = vld [vmem:[#allocation5 + $0x7b0] sm:$0xff]
    %v349 = vld [vmem:[#allocation5 + $0x7b8] sm:$0xff]
    %v350 = vld [vmem:[#allocation5 + $0x7c0] sm:$0xff]
    %v351 = vld [vmem:[#allocation5 + $0x7c8] sm:$0xff]
    %v352 = vld [vmem:[#allocation5 + $0x7d0] sm:$0xff]
    %v353 = vld [vmem:[#allocation5 + $0x7d8] sm:$0xff]
    %v354 = vld [vmem:[#allocation5 + $0x7e0] sm:$0xff]
    %v355 = vld [vmem:[#allocation5 + $0x7e8] sm:$0xff]
    %v356 = vld [vmem:[#allocation5 + $0x7f0] sm:$0xff]
    %v357 = vld [vmem:[#allocation5 + $0x7f8] sm:$0xff]
    %v358 = vld [vmem:[#allocation7] sm:$0xf]
    %v360 = vlaneseq
    %v361 = vshrl.u32 %v360, 7
    %v362 = vsub.s32 0, %v361
    %v363 = vrot.slane %v358, %v362
    %v364 = vlaneseq
    %v365 = vshrl.u32 %v364, 7
    %v366 = vsub.s32 1, %v365
    %v367 = vrot.slane %v358, %v366
    %v368 = vlaneseq
    %v369 = vshrl.u32 %v368, 7
    %v370 = vsub.s32 2, %v369
    %v371 = vrot.slane %v358, %v370
    %v372 = vlaneseq
    %v373 = vshrl.u32 %v372, 7
    %v374 = vsub.s32 3, %v373
    %v375 = vrot.slane %v358, %v374
    %v388 = vunpack.c.l.b16 %v94
    %v389 = vunpack.c.h.b16 %v94
    %v390 = vunpack.c.l.b16 %v95
    %v391 = vunpack.c.h.b16 %v95
    %v392 = vunpack.c.l.b16 %v96
    %v393 = vunpack.c.h.b16 %v96
    %v394 = vunpack.c.l.b16 %v97
    %v395 = vunpack.c.h.b16 %v97
    %v396 = vunpack.c.l.b16 %v98
    %v397 = vunpack.c.h.b16 %v98
    %v398 = vunpack.c.l.b16 %v99
    %v399 = vunpack.c.h.b16 %v99
    %v400 = vunpack.c.l.b16 %v100
    %v401 = vunpack.c.h.b16 %v100
    %v402 = vunpack.c.l.b16 %v101
    %v403 = vunpack.c.h.b16 %v101
    %v404 = vpack.c.b16 %v396, %v388
    %v405 = vpack.c.b16 %v397, %v389
    %v406 = vpack.c.b16 %v398, %v390
    %v407 = vpack.c.b16 %v399, %v391
    %v408 = vpack.c.b16 %v400, %v392
    %v409 = vpack.c.b16 %v401, %v393
    %v410 = vpack.c.b16 %v402, %v394
    %v411 = vpack.c.b16 %v403, %v395
    %v676 = vunpack.c.l.b16 %v102
    %v677 = vunpack.c.h.b16 %v102
    %v678 = vunpack.c.l.b16 %v103
    %v679 = vunpack.c.h.b16 %v103
    %v680 = vunpack.c.l.b16 %v104
    %v681 = vunpack.c.h.b16 %v104
    %v682 = vunpack.c.l.b16 %v105
    %v683 = vunpack.c.h.b16 %v105
    %v684 = vunpack.c.l.b16 %v106
    %v685 = vunpack.c.h.b16 %v106
    %v686 = vunpack.c.l.b16 %v107
    %v687 = vunpack.c.h.b16 %v107
    %v688 = vunpack.c.l.b16 %v108
    %v689 = vunpack.c.h.b16 %v108
    %v690 = vunpack.c.l.b16 %v109
    %v691 = vunpack.c.h.b16 %v109
    %v692 = vunpack.c.l.b16 %v110
    %v693 = vunpack.c.h.b16 %v110
    %v694 = vunpack.c.l.b16 %v111
    %v695 = vunpack.c.h.b16 %v111
    %v696 = vunpack.c.l.b16 %v112
    %v697 = vunpack.c.h.b16 %v112
    %v698 = vunpack.c.l.b16 %v113
    %v699 = vunpack.c.h.b16 %v113
    %v700 = vunpack.c.l.b16 %v114
    %v701 = vunpack.c.h.b16 %v114
    %v702 = vunpack.c.l.b16 %v115
    %v703 = vunpack.c.h.b16 %v115
    %v704 = vunpack.c.l.b16 %v116
    %v705 = vunpack.c.h.b16 %v116
    %v706 = vunpack.c.l.b16 %v117
    %v707 = vunpack.c.h.b16 %v117
    %v708 = vunpack.c.l.b16 %v118
    %v709 = vunpack.c.h.b16 %v118
    %v710 = vunpack.c.l.b16 %v119
    %v711 = vunpack.c.h.b16 %v119
    %v712 = vunpack.c.l.b16 %v120
    %v713 = vunpack.c.h.b16 %v120
    %v714 = vunpack.c.l.b16 %v121
    %v715 = vunpack.c.h.b16 %v121
    %v716 = vunpack.c.l.b16 %v122
    %v717 = vunpack.c.h.b16 %v122
    %v718 = vunpack.c.l.b16 %v123
    %v719 = vunpack.c.h.b16 %v123
    %v720 = vunpack.c.l.b16 %v124
    %v721 = vunpack.c.h.b16 %v124
    %v722 = vunpack.c.l.b16 %v125
    %v723 = vunpack.c.h.b16 %v125
    %v724 = vunpack.c.l.b16 %v126
    %v725 = vunpack.c.h.b16 %v126
    %v726 = vunpack.c.l.b16 %v127
    %v727 = vunpack.c.h.b16 %v127
    %v728 = vunpack.c.l.b16 %v128
    %v729 = vunpack.c.h.b16 %v128
    %v730 = vunpack.c.l.b16 %v129
    %v731 = vunpack.c.h.b16 %v129
    %v732 = vunpack.c.l.b16 %v130
    %v733 = vunpack.c.h.b16 %v130
    %v734 = vunpack.c.l.b16 %v131
    %v735 = vunpack.c.h.b16 %v131
    %v736 = vunpack.c.l.b16 %v132
    %v737 = vunpack.c.h.b16 %v132
    %v738 = vunpack.c.l.b16 %v133
    %v739 = vunpack.c.h.b16 %v133
    %v740 = vunpack.c.l.b16 %v134
    %v741 = vunpack.c.h.b16 %v134
    %v742 = vunpack.c.l.b16 %v135
    %v743 = vunpack.c.h.b16 %v135
    %v744 = vunpack.c.l.b16 %v136
    %v745 = vunpack.c.h.b16 %v136
    %v746 = vunpack.c.l.b16 %v137
    %v747 = vunpack.c.h.b16 %v137
    %v748 = vunpack.c.l.b16 %v138
    %v749 = vunpack.c.h.b16 %v138
    %v750 = vunpack.c.l.b16 %v139
    %v751 = vunpack.c.h.b16 %v139
    %v752 = vunpack.c.l.b16 %v140
    %v753 = vunpack.c.h.b16 %v140
    %v754 = vunpack.c.l.b16 %v141
    %v755 = vunpack.c.h.b16 %v141
    %v756 = vunpack.c.l.b16 %v142
    %v757 = vunpack.c.h.b16 %v142
    %v758 = vunpack.c.l.b16 %v143
    %v759 = vunpack.c.h.b16 %v143
    %v760 = vunpack.c.l.b16 %v144
    %v761 = vunpack.c.h.b16 %v144
    %v762 = vunpack.c.l.b16 %v145
    %v763 = vunpack.c.h.b16 %v145
    %v764 = vunpack.c.l.b16 %v146
    %v765 = vunpack.c.h.b16 %v146
    %v766 = vunpack.c.l.b16 %v147
    %v767 = vunpack.c.h.b16 %v147
    %v768 = vunpack.c.l.b16 %v148
    %v769 = vunpack.c.h.b16 %v148
    %v770 = vunpack.c.l.b16 %v149
    %v771 = vunpack.c.h.b16 %v149
    %v772 = vunpack.c.l.b16 %v150
    %v773 = vunpack.c.h.b16 %v150
    %v774 = vunpack.c.l.b16 %v151
    %v775 = vunpack.c.h.b16 %v151
    %v776 = vunpack.c.l.b16 %v152
    %v777 = vunpack.c.h.b16 %v152
    %v778 = vunpack.c.l.b16 %v153
    %v779 = vunpack.c.h.b16 %v153
    %v780 = vunpack.c.l.b16 %v154
    %v781 = vunpack.c.h.b16 %v154
    %v782 = vunpack.c.l.b16 %v155
    %v783 = vunpack.c.h.b16 %v155
    %v784 = vunpack.c.l.b16 %v156
    %v785 = vunpack.c.h.b16 %v156
    %v786 = vunpack.c.l.b16 %v157
    %v787 = vunpack.c.h.b16 %v157
    %v788 = vunpack.c.l.b16 %v158
    %v789 = vunpack.c.h.b16 %v158
    %v790 = vunpack.c.l.b16 %v159
    %v791 = vunpack.c.h.b16 %v159
    %v792 = vunpack.c.l.b16 %v160
    %v793 = vunpack.c.h.b16 %v160
    %v794 = vunpack.c.l.b16 %v161
    %v795 = vunpack.c.h.b16 %v161
    %v796 = vunpack.c.l.b16 %v162
    %v797 = vunpack.c.h.b16 %v162
    %v798 = vunpack.c.l.b16 %v163
    %v799 = vunpack.c.h.b16 %v163
    %v800 = vunpack.c.l.b16 %v164
    %v801 = vunpack.c.h.b16 %v164
    %v802 = vunpack.c.l.b16 %v165
    %v803 = vunpack.c.h.b16 %v165
    %v804 = vunpack.c.l.b16 %v166
    %v805 = vunpack.c.h.b16 %v166
    %v806 = vunpack.c.l.b16 %v167
    %v807 = vunpack.c.h.b16 %v167
    %v808 = vunpack.c.l.b16 %v168
    %v809 = vunpack.c.h.b16 %v168
    %v810 = vunpack.c.l.b16 %v169
    %v811 = vunpack.c.h.b16 %v169
    %v812 = vunpack.c.l.b16 %v170
    %v813 = vunpack.c.h.b16 %v170
    %v814 = vunpack.c.l.b16 %v171
    %v815 = vunpack.c.h.b16 %v171
    %v816 = vunpack.c.l.b16 %v172
    %v817 = vunpack.c.h.b16 %v172
    %v818 = vunpack.c.l.b16 %v173
    %v819 = vunpack.c.h.b16 %v173
    %v820 = vunpack.c.l.b16 %v174
    %v821 = vunpack.c.h.b16 %v174
    %v822 = vunpack.c.l.b16 %v175
    %v823 = vunpack.c.h.b16 %v175
    %v824 = vunpack.c.l.b16 %v176
    %v825 = vunpack.c.h.b16 %v176
    %v826 = vunpack.c.l.b16 %v177
    %v827 = vunpack.c.h.b16 %v177
    %v828 = vunpack.c.l.b16 %v178
    %v829 = vunpack.c.h.b16 %v178
    %v830 = vunpack.c.l.b16 %v179
    %v831 = vunpack.c.h.b16 %v179
    %v832 = vunpack.c.l.b16 %v180
    %v833 = vunpack.c.h.b16 %v180
    %v834 = vunpack.c.l.b16 %v181
    %v835 = vunpack.c.h.b16 %v181
    %v836 = vunpack.c.l.b16 %v182
    %v837 = vunpack.c.h.b16 %v182
    %v838 = vunpack.c.l.b16 %v183
    %v839 = vunpack.c.h.b16 %v183
    %v840 = vunpack.c.l.b16 %v184
    %v841 = vunpack.c.h.b16 %v184
    %v842 = vunpack.c.l.b16 %v185
    %v843 = vunpack.c.h.b16 %v185
    %v844 = vunpack.c.l.b16 %v186
    %v845 = vunpack.c.h.b16 %v186
    %v846 = vunpack.c.l.b16 %v187
    %v847 = vunpack.c.h.b16 %v187
    %v848 = vunpack.c.l.b16 %v188
    %v849 = vunpack.c.h.b16 %v188
    %v850 = vunpack.c.l.b16 %v189
    %v851 = vunpack.c.h.b16 %v189
    %v852 = vunpack.c.l.b16 %v190
    %v853 = vunpack.c.h.b16 %v190
    %v854 = vunpack.c.l.b16 %v191
    %v855 = vunpack.c.h.b16 %v191
    %v856 = vunpack.c.l.b16 %v192
    %v857 = vunpack.c.h.b16 %v192
    %v858 = vunpack.c.l.b16 %v193
    %v859 = vunpack.c.h.b16 %v193
    %v860 = vunpack.c.l.b16 %v194
    %v861 = vunpack.c.h.b16 %v194
    %v862 = vunpack.c.l.b16 %v195
    %v863 = vunpack.c.h.b16 %v195
    %v864 = vunpack.c.l.b16 %v196
    %v865 = vunpack.c.h.b16 %v196
    %v866 = vunpack.c.l.b16 %v197
    %v867 = vunpack.c.h.b16 %v197
    %v868 = vunpack.c.l.b16 %v198
    %v869 = vunpack.c.h.b16 %v198
    %v870 = vunpack.c.l.b16 %v199
    %v871 = vunpack.c.h.b16 %v199
    %v872 = vunpack.c.l.b16 %v200
    %v873 = vunpack.c.h.b16 %v200
    %v874 = vunpack.c.l.b16 %v201
    %v875 = vunpack.c.h.b16 %v201
    %v876 = vunpack.c.l.b16 %v202
    %v877 = vunpack.c.h.b16 %v202
    %v878 = vunpack.c.l.b16 %v203
    %v879 = vunpack.c.h.b16 %v203
    %v880 = vunpack.c.l.b16 %v204
    %v881 = vunpack.c.h.b16 %v204
    %v882 = vunpack.c.l.b16 %v205
    %v883 = vunpack.c.h.b16 %v205
    %v884 = vunpack.c.l.b16 %v206
    %v885 = vunpack.c.h.b16 %v206
    %v886 = vunpack.c.l.b16 %v207
    %v887 = vunpack.c.h.b16 %v207
    %v888 = vunpack.c.l.b16 %v208
    %v889 = vunpack.c.h.b16 %v208
    %v890 = vunpack.c.l.b16 %v209
    %v891 = vunpack.c.h.b16 %v209
    %v892 = vunpack.c.l.b16 %v210
    %v893 = vunpack.c.h.b16 %v210
    %v894 = vunpack.c.l.b16 %v211
    %v895 = vunpack.c.h.b16 %v211
    %v896 = vunpack.c.l.b16 %v212
    %v897 = vunpack.c.h.b16 %v212
    %v898 = vunpack.c.l.b16 %v213
    %v899 = vunpack.c.h.b16 %v213
    %v900 = vunpack.c.l.b16 %v214
    %v901 = vunpack.c.h.b16 %v214
    %v902 = vunpack.c.l.b16 %v215
    %v903 = vunpack.c.h.b16 %v215
    %v904 = vunpack.c.l.b16 %v216
    %v905 = vunpack.c.h.b16 %v216
    %v906 = vunpack.c.l.b16 %v217
    %v907 = vunpack.c.h.b16 %v217
    %v908 = vunpack.c.l.b16 %v218
    %v909 = vunpack.c.h.b16 %v218
    %v910 = vunpack.c.l.b16 %v219
    %v911 = vunpack.c.h.b16 %v219
    %v912 = vunpack.c.l.b16 %v220
    %v913 = vunpack.c.h.b16 %v220
    %v914 = vunpack.c.l.b16 %v221
    %v915 = vunpack.c.h.b16 %v221
    %v916 = vunpack.c.l.b16 %v222
    %v917 = vunpack.c.h.b16 %v222
    %v918 = vunpack.c.l.b16 %v223
    %v919 = vunpack.c.h.b16 %v223
    %v920 = vunpack.c.l.b16 %v224
    %v921 = vunpack.c.h.b16 %v224
    %v922 = vunpack.c.l.b16 %v225
    %v923 = vunpack.c.h.b16 %v225
    %v924 = vunpack.c.l.b16 %v226
    %v925 = vunpack.c.h.b16 %v226
    %v926 = vunpack.c.l.b16 %v227
    %v927 = vunpack.c.h.b16 %v227
    %v928 = vunpack.c.l.b16 %v228
    %v929 = vunpack.c.h.b16 %v228
    %v930 = vunpack.c.l.b16 %v229
    %v931 = vunpack.c.h.b16 %v229
    %v932 = vunpack.c.l.b16 %v230
    %v933 = vunpack.c.h.b16 %v230
    %v934 = vunpack.c.l.b16 %v231
    %v935 = vunpack.c.h.b16 %v231
    %v936 = vunpack.c.l.b16 %v232
    %v937 = vunpack.c.h.b16 %v232
    %v938 = vunpack.c.l.b16 %v233
    %v939 = vunpack.c.h.b16 %v233
    %v940 = vunpack.c.l.b16 %v234
    %v941 = vunpack.c.h.b16 %v234
    %v942 = vunpack.c.l.b16 %v235
    %v943 = vunpack.c.h.b16 %v235
    %v944 = vunpack.c.l.b16 %v236
    %v945 = vunpack.c.h.b16 %v236
    %v946 = vunpack.c.l.b16 %v237
    %v947 = vunpack.c.h.b16 %v237
    %v948 = vunpack.c.l.b16 %v238
    %v949 = vunpack.c.h.b16 %v238
    %v950 = vunpack.c.l.b16 %v239
    %v951 = vunpack.c.h.b16 %v239
    %v952 = vunpack.c.l.b16 %v240
    %v953 = vunpack.c.h.b16 %v240
    %v954 = vunpack.c.l.b16 %v241
    %v955 = vunpack.c.h.b16 %v241
    %v956 = vunpack.c.l.b16 %v242
    %v957 = vunpack.c.h.b16 %v242
    %v958 = vunpack.c.l.b16 %v243
    %v959 = vunpack.c.h.b16 %v243
    %v960 = vunpack.c.l.b16 %v244
    %v961 = vunpack.c.h.b16 %v244
    %v962 = vunpack.c.l.b16 %v245
    %v963 = vunpack.c.h.b16 %v245
    %v964 = vunpack.c.l.b16 %v246
    %v965 = vunpack.c.h.b16 %v246
    %v966 = vunpack.c.l.b16 %v247
    %v967 = vunpack.c.h.b16 %v247
    %v968 = vunpack.c.l.b16 %v248
    %v969 = vunpack.c.h.b16 %v248
    %v970 = vunpack.c.l.b16 %v249
    %v971 = vunpack.c.h.b16 %v249
    %v972 = vunpack.c.l.b16 %v250
    %v973 = vunpack.c.h.b16 %v250
    %v974 = vunpack.c.l.b16 %v251
    %v975 = vunpack.c.h.b16 %v251
    %v976 = vunpack.c.l.b16 %v252
    %v977 = vunpack.c.h.b16 %v252
    %v978 = vunpack.c.l.b16 %v253
    %v979 = vunpack.c.h.b16 %v253
    %v980 = vunpack.c.l.b16 %v254
    %v981 = vunpack.c.h.b16 %v254
    %v982 = vunpack.c.l.b16 %v255
    %v983 = vunpack.c.h.b16 %v255
    %v984 = vunpack.c.l.b16 %v256
    %v985 = vunpack.c.h.b16 %v256
    %v986 = vunpack.c.l.b16 %v257
    %v987 = vunpack.c.h.b16 %v257
    %v988 = vunpack.c.l.b16 %v258
    %v989 = vunpack.c.h.b16 %v258
    %v990 = vunpack.c.l.b16 %v259
    %v991 = vunpack.c.h.b16 %v259
    %v992 = vunpack.c.l.b16 %v260
    %v993 = vunpack.c.h.b16 %v260
    %v994 = vunpack.c.l.b16 %v261
    %v995 = vunpack.c.h.b16 %v261
    %v996 = vunpack.c.l.b16 %v262
    %v997 = vunpack.c.h.b16 %v262
    %v998 = vunpack.c.l.b16 %v263
    %v999 = vunpack.c.h.b16 %v263
    %v1000 = vunpack.c.l.b16 %v264
    %v1001 = vunpack.c.h.b16 %v264
    %v1002 = vunpack.c.l.b16 %v265
    %v1003 = vunpack.c.h.b16 %v265
    %v1004 = vunpack.c.l.b16 %v266
    %v1005 = vunpack.c.h.b16 %v266
    %v1006 = vunpack.c.l.b16 %v267
    %v1007 = vunpack.c.h.b16 %v267
    %v1008 = vunpack.c.l.b16 %v268
    %v1009 = vunpack.c.h.b16 %v268
    %v1010 = vunpack.c.l.b16 %v269
    %v1011 = vunpack.c.h.b16 %v269
    %v1012 = vunpack.c.l.b16 %v270
    %v1013 = vunpack.c.h.b16 %v270
    %v1014 = vunpack.c.l.b16 %v271
    %v1015 = vunpack.c.h.b16 %v271
    %v1016 = vunpack.c.l.b16 %v272
    %v1017 = vunpack.c.h.b16 %v272
    %v1018 = vunpack.c.l.b16 %v273
    %v1019 = vunpack.c.h.b16 %v273
    %v1020 = vunpack.c.l.b16 %v274
    %v1021 = vunpack.c.h.b16 %v274
    %v1022 = vunpack.c.l.b16 %v275
    %v1023 = vunpack.c.h.b16 %v275
    %v1024 = vunpack.c.l.b16 %v276
    %v1025 = vunpack.c.h.b16 %v276
    %v1026 = vunpack.c.l.b16 %v277
    %v1027 = vunpack.c.h.b16 %v277
    %v1028 = vunpack.c.l.b16 %v278
    %v1029 = vunpack.c.h.b16 %v278
    %v1030 = vunpack.c.l.b16 %v279
    %v1031 = vunpack.c.h.b16 %v279
    %v1032 = vunpack.c.l.b16 %v280
    %v1033 = vunpack.c.h.b16 %v280
    %v1034 = vunpack.c.l.b16 %v281
    %v1035 = vunpack.c.h.b16 %v281
    %v1036 = vunpack.c.l.b16 %v282
    %v1037 = vunpack.c.h.b16 %v282
    %v1038 = vunpack.c.l.b16 %v283
    %v1039 = vunpack.c.h.b16 %v283
    %v1040 = vunpack.c.l.b16 %v284
    %v1041 = vunpack.c.h.b16 %v284
    %v1042 = vunpack.c.l.b16 %v285
    %v1043 = vunpack.c.h.b16 %v285
    %v1044 = vunpack.c.l.b16 %v286
    %v1045 = vunpack.c.h.b16 %v286
    %v1046 = vunpack.c.l.b16 %v287
    %v1047 = vunpack.c.h.b16 %v287
    %v1048 = vunpack.c.l.b16 %v288
    %v1049 = vunpack.c.h.b16 %v288
    %v1050 = vunpack.c.l.b16 %v289
    %v1051 = vunpack.c.h.b16 %v289
    %v1052 = vunpack.c.l.b16 %v290
    %v1053 = vunpack.c.h.b16 %v290
    %v1054 = vunpack.c.l.b16 %v291
    %v1055 = vunpack.c.h.b16 %v291
    %v1056 = vunpack.c.l.b16 %v292
    %v1057 = vunpack.c.h.b16 %v292
    %v1058 = vunpack.c.l.b16 %v293
    %v1059 = vunpack.c.h.b16 %v293
    %v1060 = vunpack.c.l.b16 %v294
    %v1061 = vunpack.c.h.b16 %v294
    %v1062 = vunpack.c.l.b16 %v295
    %v1063 = vunpack.c.h.b16 %v295
    %v1064 = vunpack.c.l.b16 %v296
    %v1065 = vunpack.c.h.b16 %v296
    %v1066 = vunpack.c.l.b16 %v297
    %v1067 = vunpack.c.h.b16 %v297
    %v1068 = vunpack.c.l.b16 %v298
    %v1069 = vunpack.c.h.b16 %v298
    %v1070 = vunpack.c.l.b16 %v299
    %v1071 = vunpack.c.h.b16 %v299
    %v1072 = vunpack.c.l.b16 %v300
    %v1073 = vunpack.c.h.b16 %v300
    %v1074 = vunpack.c.l.b16 %v301
    %v1075 = vunpack.c.h.b16 %v301
    %v1076 = vunpack.c.l.b16 %v302
    %v1077 = vunpack.c.h.b16 %v302
    %v1078 = vunpack.c.l.b16 %v303
    %v1079 = vunpack.c.h.b16 %v303
    %v1080 = vunpack.c.l.b16 %v304
    %v1081 = vunpack.c.h.b16 %v304
    %v1082 = vunpack.c.l.b16 %v305
    %v1083 = vunpack.c.h.b16 %v305
    %v1084 = vunpack.c.l.b16 %v306
    %v1085 = vunpack.c.h.b16 %v306
    %v1086 = vunpack.c.l.b16 %v307
    %v1087 = vunpack.c.h.b16 %v307
    %v1088 = vunpack.c.l.b16 %v308
    %v1089 = vunpack.c.h.b16 %v308
    %v1090 = vunpack.c.l.b16 %v309
    %v1091 = vunpack.c.h.b16 %v309
    %v1092 = vunpack.c.l.b16 %v310
    %v1093 = vunpack.c.h.b16 %v310
    %v1094 = vunpack.c.l.b16 %v311
    %v1095 = vunpack.c.h.b16 %v311
    %v1096 = vunpack.c.l.b16 %v312
    %v1097 = vunpack.c.h.b16 %v312
    %v1098 = vunpack.c.l.b16 %v313
    %v1099 = vunpack.c.h.b16 %v313
    %v1100 = vunpack.c.l.b16 %v314
    %v1101 = vunpack.c.h.b16 %v314
    %v1102 = vunpack.c.l.b16 %v315
    %v1103 = vunpack.c.h.b16 %v315
    %v1104 = vunpack.c.l.b16 %v316
    %v1105 = vunpack.c.h.b16 %v316
    %v1106 = vunpack.c.l.b16 %v317
    %v1107 = vunpack.c.h.b16 %v317
    %v1108 = vunpack.c.l.b16 %v318
    %v1109 = vunpack.c.h.b16 %v318
    %v1110 = vunpack.c.l.b16 %v319
    %v1111 = vunpack.c.h.b16 %v319
    %v1112 = vunpack.c.l.b16 %v320
    %v1113 = vunpack.c.h.b16 %v320
    %v1114 = vunpack.c.l.b16 %v321
    %v1115 = vunpack.c.h.b16 %v321
    %v1116 = vunpack.c.l.b16 %v322
    %v1117 = vunpack.c.h.b16 %v322
    %v1118 = vunpack.c.l.b16 %v323
    %v1119 = vunpack.c.h.b16 %v323
    %v1120 = vunpack.c.l.b16 %v324
    %v1121 = vunpack.c.h.b16 %v324
    %v1122 = vunpack.c.l.b16 %v325
    %v1123 = vunpack.c.h.b16 %v325
    %v1124 = vunpack.c.l.b16 %v326
    %v1125 = vunpack.c.h.b16 %v326
    %v1126 = vunpack.c.l.b16 %v327
    %v1127 = vunpack.c.h.b16 %v327
    %v1128 = vunpack.c.l.b16 %v328
    %v1129 = vunpack.c.h.b16 %v328
    %v1130 = vunpack.c.l.b16 %v329
    %v1131 = vunpack.c.h.b16 %v329
    %v1132 = vunpack.c.l.b16 %v330
    %v1133 = vunpack.c.h.b16 %v330
    %v1134 = vunpack.c.l.b16 %v331
    %v1135 = vunpack.c.h.b16 %v331
    %v1136 = vunpack.c.l.b16 %v332
    %v1137 = vunpack.c.h.b16 %v332
    %v1138 = vunpack.c.l.b16 %v333
    %v1139 = vunpack.c.h.b16 %v333
    %v1140 = vunpack.c.l.b16 %v334
    %v1141 = vunpack.c.h.b16 %v334
    %v1142 = vunpack.c.l.b16 %v335
    %v1143 = vunpack.c.h.b16 %v335
    %v1144 = vunpack.c.l.b16 %v336
    %v1145 = vunpack.c.h.b16 %v336
    %v1146 = vunpack.c.l.b16 %v337
    %v1147 = vunpack.c.h.b16 %v337
    %v1148 = vunpack.c.l.b16 %v338
    %v1149 = vunpack.c.h.b16 %v338
    %v1150 = vunpack.c.l.b16 %v339
    %v1151 = vunpack.c.h.b16 %v339
    %v1152 = vunpack.c.l.b16 %v340
    %v1153 = vunpack.c.h.b16 %v340
    %v1154 = vunpack.c.l.b16 %v341
    %v1155 = vunpack.c.h.b16 %v341
    %v1156 = vunpack.c.l.b16 %v342
    %v1157 = vunpack.c.h.b16 %v342
    %v1158 = vunpack.c.l.b16 %v343
    %v1159 = vunpack.c.h.b16 %v343
    %v1160 = vunpack.c.l.b16 %v344
    %v1161 = vunpack.c.h.b16 %v344
    %v1162 = vunpack.c.l.b16 %v345
    %v1163 = vunpack.c.h.b16 %v345
    %v1164 = vunpack.c.l.b16 %v346
    %v1165 = vunpack.c.h.b16 %v346
    %v1166 = vunpack.c.l.b16 %v347
    %v1167 = vunpack.c.h.b16 %v347
    %v1168 = vunpack.c.l.b16 %v348
    %v1169 = vunpack.c.h.b16 %v348
    %v1170 = vunpack.c.l.b16 %v349
    %v1171 = vunpack.c.h.b16 %v349
    %v1172 = vunpack.c.l.b16 %v350
    %v1173 = vunpack.c.h.b16 %v350
    %v1174 = vunpack.c.l.b16 %v351
    %v1175 = vunpack.c.h.b16 %v351
    %v1176 = vunpack.c.l.b16 %v352
    %v1177 = vunpack.c.h.b16 %v352
    %v1178 = vunpack.c.l.b16 %v353
    %v1179 = vunpack.c.h.b16 %v353
    %v1180 = vunpack.c.l.b16 %v354
    %v1181 = vunpack.c.h.b16 %v354
    %v1182 = vunpack.c.l.b16 %v355
    %v1183 = vunpack.c.h.b16 %v355
    %v1184 = vunpack.c.l.b16 %v356
    %v1185 = vunpack.c.h.b16 %v356
    %v1186 = vunpack.c.l.b16 %v357
    %v1187 = vunpack.c.h.b16 %v357
    %v1188 = vpack.c.b16 %v680, %v676
    %v1189 = vpack.c.b16 %v681, %v677
    %v1190 = vpack.c.b16 %v682, %v678
    %v1191 = vpack.c.b16 %v683, %v679
    %v1192 = vpack.c.b16 %v688, %v684
    %v1193 = vpack.c.b16 %v689, %v685
    %v1194 = vpack.c.b16 %v690, %v686
    %v1195 = vpack.c.b16 %v691, %v687
    %v1196 = vpack.c.b16 %v696, %v692
    %v1197 = vpack.c.b16 %v697, %v693
    %v1198 = vpack.c.b16 %v698, %v694
    %v1199 = vpack.c.b16 %v699, %v695
    %v1200 = vpack.c.b16 %v704, %v700
    %v1201 = vpack.c.b16 %v705, %v701
    %v1202 = vpack.c.b16 %v706, %v702
    %v1203 = vpack.c.b16 %v707, %v703
    %v1204 = vpack.c.b16 %v712, %v708
    %v1205 = vpack.c.b16 %v713, %v709
    %v1206 = vpack.c.b16 %v714, %v710
    %v1207 = vpack.c.b16 %v715, %v711
    %v1208 = vpack.c.b16 %v720, %v716
    %v1209 = vpack.c.b16 %v721, %v717
    %v1210 = vpack.c.b16 %v722, %v718
    %v1211 = vpack.c.b16 %v723, %v719
    %v1212 = vpack.c.b16 %v728, %v724
    %v1213 = vpack.c.b16 %v729, %v725
    %v1214 = vpack.c.b16 %v730, %v726
    %v1215 = vpack.c.b16 %v731, %v727
    %v1216 = vpack.c.b16 %v736, %v732
    %v1217 = vpack.c.b16 %v737, %v733
    %v1218 = vpack.c.b16 %v738, %v734
    %v1219 = vpack.c.b16 %v739, %v735
    %v1220 = vpack.c.b16 %v744, %v740
    %v1221 = vpack.c.b16 %v745, %v741
    %v1222 = vpack.c.b16 %v746, %v742
    %v1223 = vpack.c.b16 %v747, %v743
    %v1224 = vpack.c.b16 %v752, %v748
    %v1225 = vpack.c.b16 %v753, %v749
    %v1226 = vpack.c.b16 %v754, %v750
    %v1227 = vpack.c.b16 %v755, %v751
    %v1228 = vpack.c.b16 %v760, %v756
    %v1229 = vpack.c.b16 %v761, %v757
    %v1230 = vpack.c.b16 %v762, %v758
    %v1231 = vpack.c.b16 %v763, %v759
    %v1232 = vpack.c.b16 %v768, %v764
    %v1233 = vpack.c.b16 %v769, %v765
    %v1234 = vpack.c.b16 %v770, %v766
    %v1235 = vpack.c.b16 %v771, %v767
    %v1236 = vpack.c.b16 %v776, %v772
    %v1237 = vpack.c.b16 %v777, %v773
    %v1238 = vpack.c.b16 %v778, %v774
    %v1239 = vpack.c.b16 %v779, %v775
    %v1240 = vpack.c.b16 %v784, %v780
    %v1241 = vpack.c.b16 %v785, %v781
    %v1242 = vpack.c.b16 %v786, %v782
    %v1243 = vpack.c.b16 %v787, %v783
    %v1244 = vpack.c.b16 %v792, %v788
    %v1245 = vpack.c.b16 %v793, %v789
    %v1246 = vpack.c.b16 %v794, %v790
    %v1247 = vpack.c.b16 %v795, %v791
    %v1248 = vpack.c.b16 %v800, %v796
    %v1249 = vpack.c.b16 %v801, %v797
    %v1250 = vpack.c.b16 %v802, %v798
    %v1251 = vpack.c.b16 %v803, %v799
    %v1252 = vpack.c.b16 %v808, %v804
    %v1253 = vpack.c.b16 %v809, %v805
    %v1254 = vpack.c.b16 %v810, %v806
    %v1255 = vpack.c.b16 %v811, %v807
    %v1256 = vpack.c.b16 %v816, %v812
    %v1257 = vpack.c.b16 %v817, %v813
    %v1258 = vpack.c.b16 %v818, %v814
    %v1259 = vpack.c.b16 %v819, %v815
    %v1260 = vpack.c.b16 %v824, %v820
    %v1261 = vpack.c.b16 %v825, %v821
    %v1262 = vpack.c.b16 %v826, %v822
    %v1263 = vpack.c.b16 %v827, %v823
    %v1264 = vpack.c.b16 %v832, %v828
    %v1265 = vpack.c.b16 %v833, %v829
    %v1266 = vpack.c.b16 %v834, %v830
    %v1267 = vpack.c.b16 %v835, %v831
    %v1268 = vpack.c.b16 %v840, %v836
    %v1269 = vpack.c.b16 %v841, %v837
    %v1270 = vpack.c.b16 %v842, %v838
    %v1271 = vpack.c.b16 %v843, %v839
    %v1272 = vpack.c.b16 %v848, %v844
    %v1273 = vpack.c.b16 %v849, %v845
    %v1274 = vpack.c.b16 %v850, %v846
    %v1275 = vpack.c.b16 %v851, %v847
    %v1276 = vpack.c.b16 %v856, %v852
    %v1277 = vpack.c.b16 %v857, %v853
    %v1278 = vpack.c.b16 %v858, %v854
    %v1279 = vpack.c.b16 %v859, %v855
    %v1280 = vpack.c.b16 %v864, %v860
    %v1281 = vpack.c.b16 %v865, %v861
    %v1282 = vpack.c.b16 %v866, %v862
    %v1283 = vpack.c.b16 %v867, %v863
    %v1284 = vpack.c.b16 %v872, %v868
    %v1285 = vpack.c.b16 %v873, %v869
    %v1286 = vpack.c.b16 %v874, %v870
    %v1287 = vpack.c.b16 %v875, %v871
    %v1288 = vpack.c.b16 %v880, %v876
    %v1289 = vpack.c.b16 %v881, %v877
    %v1290 = vpack.c.b16 %v882, %v878
    %v1291 = vpack.c.b16 %v883, %v879
    %v1292 = vpack.c.b16 %v888, %v884
    %v1293 = vpack.c.b16 %v889, %v885
    %v1294 = vpack.c.b16 %v890, %v886
    %v1295 = vpack.c.b16 %v891, %v887
    %v1296 = vpack.c.b16 %v896, %v892
    %v1297 = vpack.c.b16 %v897, %v893
    %v1298 = vpack.c.b16 %v898, %v894
    %v1299 = vpack.c.b16 %v899, %v895
    %v1300 = vpack.c.b16 %v904, %v900
    %v1301 = vpack.c.b16 %v905, %v901
    %v1302 = vpack.c.b16 %v906, %v902
    %v1303 = vpack.c.b16 %v907, %v903
    %v1304 = vpack.c.b16 %v912, %v908
    %v1305 = vpack.c.b16 %v913, %v909
    %v1306 = vpack.c.b16 %v914, %v910
    %v1307 = vpack.c.b16 %v915, %v911
    %v1308 = vpack.c.b16 %v920, %v916
    %v1309 = vpack.c.b16 %v921, %v917
    %v1310 = vpack.c.b16 %v922, %v918
    %v1311 = vpack.c.b16 %v923, %v919
    %v1312 = vpack.c.b16 %v928, %v924
    %v1313 = vpack.c.b16 %v929, %v925
    %v1314 = vpack.c.b16 %v930, %v926
    %v1315 = vpack.c.b16 %v931, %v927
    %v1316 = vpack.c.b16 %v936, %v932
    %v1317 = vpack.c.b16 %v937, %v933
    %v1318 = vpack.c.b16 %v938, %v934
    %v1319 = vpack.c.b16 %v939, %v935
    %v1320 = vpack.c.b16 %v944, %v940
    %v1321 = vpack.c.b16 %v945, %v941
    %v1322 = vpack.c.b16 %v946, %v942
    %v1323 = vpack.c.b16 %v947, %v943
    %v1324 = vpack.c.b16 %v952, %v948
    %v1325 = vpack.c.b16 %v953, %v949
    %v1326 = vpack.c.b16 %v954, %v950
    %v1327 = vpack.c.b16 %v955, %v951
    %v1328 = vpack.c.b16 %v960, %v956
    %v1329 = vpack.c.b16 %v961, %v957
    %v1330 = vpack.c.b16 %v962, %v958
    %v1331 = vpack.c.b16 %v963, %v959
    %v1332 = vpack.c.b16 %v968, %v964
    %v1333 = vpack.c.b16 %v969, %v965
    %v1334 = vpack.c.b16 %v970, %v966
    %v1335 = vpack.c.b16 %v971, %v967
    %v1336 = vpack.c.b16 %v976, %v972
    %v1337 = vpack.c.b16 %v977, %v973
    %v1338 = vpack.c.b16 %v978, %v974
    %v1339 = vpack.c.b16 %v979, %v975
    %v1340 = vpack.c.b16 %v984, %v980
    %v1341 = vpack.c.b16 %v985, %v981
    %v1342 = vpack.c.b16 %v986, %v982
    %v1343 = vpack.c.b16 %v987, %v983
    %v1344 = vpack.c.b16 %v992, %v988
    %v1345 = vpack.c.b16 %v993, %v989
    %v1346 = vpack.c.b16 %v994, %v990
    %v1347 = vpack.c.b16 %v995, %v991
    %v1348 = vpack.c.b16 %v1000, %v996
    %v1349 = vpack.c.b16 %v1001, %v997
    %v1350 = vpack.c.b16 %v1002, %v998
    %v1351 = vpack.c.b16 %v1003, %v999
    %v1352 = vpack.c.b16 %v1008, %v1004
    %v1353 = vpack.c.b16 %v1009, %v1005
    %v1354 = vpack.c.b16 %v1010, %v1006
    %v1355 = vpack.c.b16 %v1011, %v1007
    %v1356 = vpack.c.b16 %v1016, %v1012
    %v1357 = vpack.c.b16 %v1017, %v1013
    %v1358 = vpack.c.b16 %v1018, %v1014
    %v1359 = vpack.c.b16 %v1019, %v1015
    %v1360 = vpack.c.b16 %v1024, %v1020
    %v1361 = vpack.c.b16 %v1025, %v1021
    %v1362 = vpack.c.b16 %v1026, %v1022
    %v1363 = vpack.c.b16 %v1027, %v1023
    %v1364 = vpack.c.b16 %v1032, %v1028
    %v1365 = vpack.c.b16 %v1033, %v1029
    %v1366 = vpack.c.b16 %v1034, %v1030
    %v1367 = vpack.c.b16 %v1035, %v1031
    %v1368 = vpack.c.b16 %v1040, %v1036
    %v1369 = vpack.c.b16 %v1041, %v1037
    %v1370 = vpack.c.b16 %v1042, %v1038
    %v1371 = vpack.c.b16 %v1043, %v1039
    %v1372 = vpack.c.b16 %v1048, %v1044
    %v1373 = vpack.c.b16 %v1049, %v1045
    %v1374 = vpack.c.b16 %v1050, %v1046
    %v1375 = vpack.c.b16 %v1051, %v1047
    %v1376 = vpack.c.b16 %v1056, %v1052
    %v1377 = vpack.c.b16 %v1057, %v1053
    %v1378 = vpack.c.b16 %v1058, %v1054
    %v1379 = vpack.c.b16 %v1059, %v1055
    %v1380 = vpack.c.b16 %v1064, %v1060
    %v1381 = vpack.c.b16 %v1065, %v1061
    %v1382 = vpack.c.b16 %v1066, %v1062
    %v1383 = vpack.c.b16 %v1067, %v1063
    %v1384 = vpack.c.b16 %v1072, %v1068
    %v1385 = vpack.c.b16 %v1073, %v1069
    %v1386 = vpack.c.b16 %v1074, %v1070
    %v1387 = vpack.c.b16 %v1075, %v1071
    %v1388 = vpack.c.b16 %v1080, %v1076
    %v1389 = vpack.c.b16 %v1081, %v1077
    %v1390 = vpack.c.b16 %v1082, %v1078
    %v1391 = vpack.c.b16 %v1083, %v1079
    %v1392 = vpack.c.b16 %v1088, %v1084
    %v1393 = vpack.c.b16 %v1089, %v1085
    %v1394 = vpack.c.b16 %v1090, %v1086
    %v1395 = vpack.c.b16 %v1091, %v1087
    %v1396 = vpack.c.b16 %v1096, %v1092
    %v1397 = vpack.c.b16 %v1097, %v1093
    %v1398 = vpack.c.b16 %v1098, %v1094
    %v1399 = vpack.c.b16 %v1099, %v1095
    %v1400 = vpack.c.b16 %v1104, %v1100
    %v1401 = vpack.c.b16 %v1105, %v1101
    %v1402 = vpack.c.b16 %v1106, %v1102
    %v1403 = vpack.c.b16 %v1107, %v1103
    %v1404 = vpack.c.b16 %v1112, %v1108
    %v1405 = vpack.c.b16 %v1113, %v1109
    %v1406 = vpack.c.b16 %v1114, %v1110
    %v1407 = vpack.c.b16 %v1115, %v1111
    %v1408 = vpack.c.b16 %v1120, %v1116
    %v1409 = vpack.c.b16 %v1121, %v1117
    %v1410 = vpack.c.b16 %v1122, %v1118
    %v1411 = vpack.c.b16 %v1123, %v1119
    %v1412 = vpack.c.b16 %v1128, %v1124
    %v1413 = vpack.c.b16 %v1129, %v1125
    %v1414 = vpack.c.b16 %v1130, %v1126
    %v1415 = vpack.c.b16 %v1131, %v1127
    %v1416 = vpack.c.b16 %v1136, %v1132
    %v1417 = vpack.c.b16 %v1137, %v1133
    %v1418 = vpack.c.b16 %v1138, %v1134
    %v1419 = vpack.c.b16 %v1139, %v1135
    %v1420 = vpack.c.b16 %v1144, %v1140
    %v1421 = vpack.c.b16 %v1145, %v1141
    %v1422 = vpack.c.b16 %v1146, %v1142
    %v1423 = vpack.c.b16 %v1147, %v1143
    %v1424 = vpack.c.b16 %v1152, %v1148
    %v1425 = vpack.c.b16 %v1153, %v1149
    %v1426 = vpack.c.b16 %v1154, %v1150
    %v1427 = vpack.c.b16 %v1155, %v1151
    %v1428 = vpack.c.b16 %v1160, %v1156
    %v1429 = vpack.c.b16 %v1161, %v1157
    %v1430 = vpack.c.b16 %v1162, %v1158
    %v1431 = vpack.c.b16 %v1163, %v1159
    %v1432 = vpack.c.b16 %v1168, %v1164
    %v1433 = vpack.c.b16 %v1169, %v1165
    %v1434 = vpack.c.b16 %v1170, %v1166
    %v1435 = vpack.c.b16 %v1171, %v1167
    %v1436 = vpack.c.b16 %v1176, %v1172
    %v1437 = vpack.c.b16 %v1177, %v1173
    %v1438 = vpack.c.b16 %v1178, %v1174
    %v1439 = vpack.c.b16 %v1179, %v1175
    %v1440 = vpack.c.b16 %v1184, %v1180
    %v1441 = vpack.c.b16 %v1185, %v1181
    %v1442 = vpack.c.b16 %v1186, %v1182
    %v1443 = vpack.c.b16 %v1187, %v1183
    %1700 = vmatprep.subr.bf16.mxu0 %v1217
    %1701 = vmatpush1.bf16.msra.mxu0 %v1216
    %1702 = vmatprep.subr.bf16.mxu0 %v1213
    %1703 = vmatpush1.bf16.msra.mxu0 %v1212
    %1704 = vmatprep.subr.bf16.mxu0 %v1209
    %1705 = vmatpush1.bf16.msra.mxu0 %v1208
    %1706 = vmatprep.subr.bf16.mxu0 %v1205
    %1707 = vmatpush1.bf16.msra.mxu0 %v1204
    %1708 = vmatprep.subr.bf16.mxu0 %v1201
    %1709 = vmatpush1.bf16.msra.mxu0 %v1200
    %1710 = vmatprep.subr.bf16.mxu0 %v1197
    %1711 = vmatpush1.bf16.msra.mxu0 %v1196
    %1712 = vmatprep.subr.bf16.mxu0 %v1193
    %1713 = vmatpush1.bf16.msra.mxu0 %v1192
    %1714 = vmatprep.subr.bf16.mxu0 %v1189
    %1715 = vmatpush1.bf16.msra.mxu0 %v1188
    %1716 = vmatprep.subr.bf16.mxu0 %v1249
    %1717 = vmatpush2.bf16.msra.mxu0 %v1248
    %1718 = vmatprep.subr.bf16.mxu0 %v1245
    %1719 = vmatpush2.bf16.msra.mxu0 %v1244
    %1720 = vmatprep.subr.bf16.mxu0 %v1241
    %1721 = vmatpush2.bf16.msra.mxu0 %v1240
    %1722 = vmatprep.subr.bf16.mxu0 %v1237
    %1723 = vmatpush2.bf16.msra.mxu0 %v1236
    %1724 = vmatprep.subr.bf16.mxu0 %v1233
    %1725 = vmatpush2.bf16.msra.mxu0 %v1232
    %1726 = vmatprep.subr.bf16.mxu0 %v1229
    %1727 = vmatpush2.bf16.msra.mxu0 %v1228
    %1728 = vmatprep.subr.bf16.mxu0 %v1225
    %1729 = vmatpush2.bf16.msra.mxu0 %v1224
    %1730 = vmatprep.subr.bf16.mxu0 %v1221
    %1731 = vmatpush2.bf16.msra.mxu0 %v1220
    %1732 = vmatprep.mubr.bf16.mxu0 %v405
    %1733 = vmatmul.mubr.bf16.gmra.mxu0 %v404
    %v1734 = vpop.f32.mrf.mxu0
    %v1735 = vadd.f32 %v363, %v1734
    %v1736 = vpop.f32.mrf.mxu0
    %v1737 = vadd.f32 %v367, %v1736
    %v1738 = vpop.f32.mrf.mxu0
    %v1739 = vadd.f32 %v363, %v1738
    %v1740 = vpop.f32.mrf.mxu0
    %v1741 = vadd.f32 %v367, %v1740
    %1742 = vdwg.mxu0
    %1743 = vmatprep.subr.bf16.mxu0 %v1281
    %1744 = vmatpush1.bf16.msra.mxu0 %v1280
    %1745 = vmatprep.subr.bf16.mxu0 %v1277
    %1746 = vmatpush1.bf16.msra.mxu0 %v1276
    %1747 = vmatprep.subr.bf16.mxu0 %v1273
    %1748 = vmatpush1.bf16.msra.mxu0 %v1272
    %1749 = vmatprep.subr.bf16.mxu0 %v1269
    %1750 = vmatpush1.bf16.msra.mxu0 %v1268
    %1751 = vmatprep.subr.bf16.mxu0 %v1265
    %1752 = vmatpush1.bf16.msra.mxu0 %v1264
    %1753 = vmatprep.subr.bf16.mxu0 %v1261
    %1754 = vmatpush1.bf16.msra.mxu0 %v1260
    %1755 = vmatprep.subr.bf16.mxu0 %v1257
    %1756 = vmatpush1.bf16.msra.mxu0 %v1256
    %1757 = vmatprep.subr.bf16.mxu0 %v1253
    %1758 = vmatpush1.bf16.msra.mxu0 %v1252
    %1759 = vmatprep.subr.bf16.mxu0 %v1313
    %1760 = vmatpush2.bf16.msra.mxu0 %v1312
    %1761 = vmatprep.subr.bf16.mxu0 %v1309
    %1762 = vmatpush2.bf16.msra.mxu0 %v1308
    %1763 = vmatprep.subr.bf16.mxu0 %v1305
    %1764 = vmatpush2.bf16.msra.mxu0 %v1304
    %1765 = vmatprep.subr.bf16.mxu0 %v1301
    %1766 = vmatpush2.bf16.msra.mxu0 %v1300
    %1767 = vmatprep.subr.bf16.mxu0 %v1297
    %1768 = vmatpush2.bf16.msra.mxu0 %v1296
    %1769 = vmatprep.subr.bf16.mxu0 %v1293
    %1770 = vmatpush2.bf16.msra.mxu0 %v1292
    %1771 = vmatprep.subr.bf16.mxu0 %v1289
    %1772 = vmatpush2.bf16.msra.mxu0 %v1288
    %1773 = vmatprep.subr.bf16.mxu0 %v1285
    %1774 = vmatpush2.bf16.msra.mxu0 %v1284
    %1775 = vmatprep.mubr.bf16.mxu0 %v407
    %1776 = vmatmul.mubr.bf16.gmra.mxu0 %v406
    %v1777 = vpop.f32.mrf.mxu0
    %v1778 = vadd.f32 %v1735, %v1777
    %v1779 = vpop.f32.mrf.mxu0
    %v1780 = vadd.f32 %v1737, %v1779
    %v1781 = vpop.f32.mrf.mxu0
    %v1782 = vadd.f32 %v1739, %v1781
    %v1783 = vpop.f32.mrf.mxu0
    %v1784 = vadd.f32 %v1741, %v1783
    %1785 = vdwg.mxu0
    %1786 = vmatprep.subr.bf16.mxu0 %v1345
    %1787 = vmatpush1.bf16.msra.mxu0 %v1344
    %1788 = vmatprep.subr.bf16.mxu0 %v1341
    %1789 = vmatpush1.bf16.msra.mxu0 %v1340
    %1790 = vmatprep.subr.bf16.mxu0 %v1337
    %1791 = vmatpush1.bf16.msra.mxu0 %v1336
    %1792 = vmatprep.subr.bf16.mxu0 %v1333
    %1793 = vmatpush1.bf16.msra.mxu0 %v1332
    %1794 = vmatprep.subr.bf16.mxu0 %v1329
    %1795 = vmatpush1.bf16.msra.mxu0 %v1328
    %1796 = vmatprep.subr.bf16.mxu0 %v1325
    %1797 = vmatpush1.bf16.msra.mxu0 %v1324
    %1798 = vmatprep.subr.bf16.mxu0 %v1321
    %1799 = vmatpush1.bf16.msra.mxu0 %v1320
    %1800 = vmatprep.subr.bf16.mxu0 %v1317
    %1801 = vmatpush1.bf16.msra.mxu0 %v1316
    %1802 = vmatprep.subr.bf16.mxu0 %v1377
    %1803 = vmatpush2.bf16.msra.mxu0 %v1376
    %1804 = vmatprep.subr.bf16.mxu0 %v1373
    %1805 = vmatpush2.bf16.msra.mxu0 %v1372
    %1806 = vmatprep.subr.bf16.mxu0 %v1369
    %1807 = vmatpush2.bf16.msra.mxu0 %v1368
    %1808 = vmatprep.subr.bf16.mxu0 %v1365
    %1809 = vmatpush2.bf16.msra.mxu0 %v1364
    %1810 = vmatprep.subr.bf16.mxu0 %v1361
    %1811 = vmatpush2.bf16.msra.mxu0 %v1360
    %1812 = vmatprep.subr.bf16.mxu0 %v1357
    %1813 = vmatpush2.bf16.msra.mxu0 %v1356
    %1814 = vmatprep.subr.bf16.mxu0 %v1353
    %1815 = vmatpush2.bf16.msra.mxu0 %v1352
    %1816 = vmatprep.subr.bf16.mxu0 %v1349
    %1817 = vmatpush2.bf16.msra.mxu0 %v1348
    %1818 = vmatprep.mubr.bf16.mxu0 %v409
    %1819 = vmatmul.mubr.bf16.gmra.mxu0 %v408
    %v1820 = vpop.f32.mrf.mxu0
    %v1821 = vadd.f32 %v1778, %v1820
    %v1822 = vpop.f32.mrf.mxu0
    %v1823 = vadd.f32 %v1780, %v1822
    %v1824 = vpop.f32.mrf.mxu0
    %v1825 = vadd.f32 %v1782, %v1824
    %v1826 = vpop.f32.mrf.mxu0
    %v1827 = vadd.f32 %v1784, %v1826
    %1828 = vdwg.mxu0
    %1829 = vmatprep.subr.bf16.mxu0 %v1409
    %1830 = vmatpush1.bf16.msra.mxu0 %v1408
    %1831 = vmatprep.subr.bf16.mxu0 %v1405
    %1832 = vmatpush1.bf16.msra.mxu0 %v1404
    %1833 = vmatprep.subr.bf16.mxu0 %v1401
    %1834 = vmatpush1.bf16.msra.mxu0 %v1400
    %1835 = vmatprep.subr.bf16.mxu0 %v1397
    %1836 = vmatpush1.bf16.msra.mxu0 %v1396
    %1837 = vmatprep.subr.bf16.mxu0 %v1393
    %1838 = vmatpush1.bf16.msra.mxu0 %v1392
    %1839 = vmatprep.subr.bf16.mxu0 %v1389
    %1840 = vmatpush1.bf16.msra.mxu0 %v1388
    %1841 = vmatprep.subr.bf16.mxu0 %v1385
    %1842 = vmatpush1.bf16.msra.mxu0 %v1384
    %1843 = vmatprep.subr.bf16.mxu0 %v1381
    %1844 = vmatpush1.bf16.msra.mxu0 %v1380
    %1845 = vmatprep.subr.bf16.mxu0 %v1441
    %1846 = vmatpush2.bf16.msra.mxu0 %v1440
    %1847 = vmatprep.subr.bf16.mxu0 %v1437
    %1848 = vmatpush2.bf16.msra.mxu0 %v1436
    %1849 = vmatprep.subr.bf16.mxu0 %v1433
    %1850 = vmatpush2.bf16.msra.mxu0 %v1432
    %1851 = vmatprep.subr.bf16.mxu0 %v1429
    %1852 = vmatpush2.bf16.msra.mxu0 %v1428
    %1853 = vmatprep.subr.bf16.mxu0 %v1425
    %1854 = vmatpush2.bf16.msra.mxu0 %v1424
    %1855 = vmatprep.subr.bf16.mxu0 %v1421
    %1856 = vmatpush2.bf16.msra.mxu0 %v1420
    %1857 = vmatprep.subr.bf16.mxu0 %v1417
    %1858 = vmatpush2.bf16.msra.mxu0 %v1416
    %1859 = vmatprep.subr.bf16.mxu0 %v1413
    %1860 = vmatpush2.bf16.msra.mxu0 %v1412
    %1861 = vmatprep.mubr.bf16.mxu0 %v411
    %1862 = vmatmul.mubr.bf16.gmra.mxu0 %v410
    %v1863 = vpop.f32.mrf.mxu0
    %v1864 = vadd.f32 %v1821, %v1863
    %v1865 = vpop.f32.mrf.mxu0
    %v1866 = vadd.f32 %v1823, %v1865
    %v1867 = vpop.f32.mrf.mxu0
    %v1868 = vadd.f32 %v1825, %v1867
    %v1869 = vpop.f32.mrf.mxu0
    %v1870 = vadd.f32 %v1827, %v1869
    %1871 = vdwg.mxu0
    %1872 = vmatprep.subr.bf16.mxu0 %v1219
    %1873 = vmatpush1.bf16.msra.mxu0 %v1218
    %1874 = vmatprep.subr.bf16.mxu0 %v1215
    %1875 = vmatpush1.bf16.msra.mxu0 %v1214
    %1876 = vmatprep.subr.bf16.mxu0 %v1211
    %1877 = vmatpush1.bf16.msra.mxu0 %v1210
    %1878 = vmatprep.subr.bf16.mxu0 %v1207
    %1879 = vmatpush1.bf16.msra.mxu0 %v1206
    %1880 = vmatprep.subr.bf16.mxu0 %v1203
    %1881 = vmatpush1.bf16.msra.mxu0 %v1202
    %1882 = vmatprep.subr.bf16.mxu0 %v1199
    %1883 = vmatpush1.bf16.msra.mxu0 %v1198
    %1884 = vmatprep.subr.bf16.mxu0 %v1195
    %1885 = vmatpush1.bf16.msra.mxu0 %v1194
    %1886 = vmatprep.subr.bf16.mxu0 %v1191
    %1887 = vmatpush1.bf16.msra.mxu0 %v1190
    %1888 = vmatprep.subr.bf16.mxu0 %v1251
    %1889 = vmatpush2.bf16.msra.mxu0 %v1250
    %1890 = vmatprep.subr.bf16.mxu0 %v1247
    %1891 = vmatpush2.bf16.msra.mxu0 %v1246
    %1892 = vmatprep.subr.bf16.mxu0 %v1243
    %1893 = vmatpush2.bf16.msra.mxu0 %v1242
    %1894 = vmatprep.subr.bf16.mxu0 %v1239
    %1895 = vmatpush2.bf16.msra.mxu0 %v1238
    %1896 = vmatprep.subr.bf16.mxu0 %v1235
    %1897 = vmatpush2.bf16.msra.mxu0 %v1234
    %1898 = vmatprep.subr.bf16.mxu0 %v1231
    %1899 = vmatpush2.bf16.msra.mxu0 %v1230
    %1900 = vmatprep.subr.bf16.mxu0 %v1227
    %1901 = vmatpush2.bf16.msra.mxu0 %v1226
    %1902 = vmatprep.subr.bf16.mxu0 %v1223
    %1903 = vmatpush2.bf16.msra.mxu0 %v1222
    %1904 = vmatprep.mubr.bf16.mxu0 %v405
    %1905 = vmatmul.mubr.bf16.gmra.mxu0 %v404
    %v1906 = vpop.f32.mrf.mxu0
    %v1907 = vadd.f32 %v371, %v1906
    %v1908 = vpop.f32.mrf.mxu0
    %v1909 = vadd.f32 %v375, %v1908
    %v1910 = vpop.f32.mrf.mxu0
    %v1911 = vadd.f32 %v371, %v1910
    %v1912 = vpop.f32.mrf.mxu0
    %v1913 = vadd.f32 %v375, %v1912
    %1914 = vdwg.mxu0
    %1915 = vmatprep.subr.bf16.mxu0 %v1283
    %1916 = vmatpush1.bf16.msra.mxu0 %v1282
    %1917 = vmatprep.subr.bf16.mxu0 %v1279
    %1918 = vmatpush1.bf16.msra.mxu0 %v1278
    %1919 = vmatprep.subr.bf16.mxu0 %v1275
    %1920 = vmatpush1.bf16.msra.mxu0 %v1274
    %1921 = vmatprep.subr.bf16.mxu0 %v1271
    %1922 = vmatpush1.bf16.msra.mxu0 %v1270
    %1923 = vmatprep.subr.bf16.mxu0 %v1267
    %1924 = vmatpush1.bf16.msra.mxu0 %v1266
    %1925 = vmatprep.subr.bf16.mxu0 %v1263
    %1926 = vmatpush1.bf16.msra.mxu0 %v1262
    %1927 = vmatprep.subr.bf16.mxu0 %v1259
    %1928 = vmatpush1.bf16.msra.mxu0 %v1258
    %1929 = vmatprep.subr.bf16.mxu0 %v1255
    %1930 = vmatpush1.bf16.msra.mxu0 %v1254
    %1931 = vmatprep.subr.bf16.mxu0 %v1315
    %1932 = vmatpush2.bf16.msra.mxu0 %v1314
    %1933 = vmatprep.subr.bf16.mxu0 %v1311
    %1934 = vmatpush2.bf16.msra.mxu0 %v1310
    %1935 = vmatprep.subr.bf16.mxu0 %v1307
    %1936 = vmatpush2.bf16.msra.mxu0 %v1306
    %1937 = vmatprep.subr.bf16.mxu0 %v1303
    %1938 = vmatpush2.bf16.msra.mxu0 %v1302
    %1939 = vmatprep.subr.bf16.mxu0 %v1299
    %1940 = vmatpush2.bf16.msra.mxu0 %v1298
    %1941 = vmatprep.subr.bf16.mxu0 %v1295
    %1942 = vmatpush2.bf16.msra.mxu0 %v1294
    %1943 = vmatprep.subr.bf16.mxu0 %v1291
    %1944 = vmatpush2.bf16.msra.mxu0 %v1290
    %1945 = vmatprep.subr.bf16.mxu0 %v1287
    %1946 = vmatpush2.bf16.msra.mxu0 %v1286
    %1947 = vmatprep.mubr.bf16.mxu0 %v407
    %1948 = vmatmul.mubr.bf16.gmra.mxu0 %v406
    %v1949 = vpop.f32.mrf.mxu0
    %v1950 = vadd.f32 %v1907, %v1949
    %v1951 = vpop.f32.mrf.mxu0
    %v1952 = vadd.f32 %v1909, %v1951
    %v1953 = vpop.f32.mrf.mxu0
    %v1954 = vadd.f32 %v1911, %v1953
    %v1955 = vpop.f32.mrf.mxu0
    %v1956 = vadd.f32 %v1913, %v1955
    %1957 = vdwg.mxu0
    %1958 = vmatprep.subr.bf16.mxu0 %v1347
    %1959 = vmatpush1.bf16.msra.mxu0 %v1346
    %1960 = vmatprep.subr.bf16.mxu0 %v1343
    %1961 = vmatpush1.bf16.msra.mxu0 %v1342
    %1962 = vmatprep.subr.bf16.mxu0 %v1339
    %1963 = vmatpush1.bf16.msra.mxu0 %v1338
    %1964 = vmatprep.subr.bf16.mxu0 %v1335
    %1965 = vmatpush1.bf16.msra.mxu0 %v1334
    %1966 = vmatprep.subr.bf16.mxu0 %v1331
    %1967 = vmatpush1.bf16.msra.mxu0 %v1330
    %1968 = vmatprep.subr.bf16.mxu0 %v1327
    %1969 = vmatpush1.bf16.msra.mxu0 %v1326
    %1970 = vmatprep.subr.bf16.mxu0 %v1323
    %1971 = vmatpush1.bf16.msra.mxu0 %v1322
    %1972 = vmatprep.subr.bf16.mxu0 %v1319
    %1973 = vmatpush1.bf16.msra.mxu0 %v1318
    %1974 = vmatprep.subr.bf16.mxu0 %v1379
    %1975 = vmatpush2.bf16.msra.mxu0 %v1378
    %1976 = vmatprep.subr.bf16.mxu0 %v1375
    %1977 = vmatpush2.bf16.msra.mxu0 %v1374
    %1978 = vmatprep.subr.bf16.mxu0 %v1371
    %1979 = vmatpush2.bf16.msra.mxu0 %v1370
    %1980 = vmatprep.subr.bf16.mxu0 %v1367
    %1981 = vmatpush2.bf16.msra.mxu0 %v1366
    %1982 = vmatprep.subr.bf16.mxu0 %v1363
    %1983 = vmatpush2.bf16.msra.mxu0 %v1362
    %1984 = vmatprep.subr.bf16.mxu0 %v1359
    %1985 = vmatpush2.bf16.msra.mxu0 %v1358
    %1986 = vmatprep.subr.bf16.mxu0 %v1355
    %1987 = vmatpush2.bf16.msra.mxu0 %v1354
    %1988 = vmatprep.subr.bf16.mxu0 %v1351
    %1989 = vmatpush2.bf16.msra.mxu0 %v1350
    %1990 = vmatprep.mubr.bf16.mxu0 %v409
    %1991 = vmatmul.mubr.bf16.gmra.mxu0 %v408
    %v1992 = vpop.f32.mrf.mxu0
    %v1993 = vadd.f32 %v1950, %v1992
    %v1994 = vpop.f32.mrf.mxu0
    %v1995 = vadd.f32 %v1952, %v1994
    %v1996 = vpop.f32.mrf.mxu0
    %v1997 = vadd.f32 %v1954, %v1996
    %v1998 = vpop.f32.mrf.mxu0
    %v1999 = vadd.f32 %v1956, %v1998
    %2000 = vdwg.mxu0
    %2001 = vmatprep.subr.bf16.mxu0 %v1411
    %2002 = vmatpush1.bf16.msra.mxu0 %v1410
    %2003 = vmatprep.subr.bf16.mxu0 %v1407
    %2004 = vmatpush1.bf16.msra.mxu0 %v1406
    %2005 = vmatprep.subr.bf16.mxu0 %v1403
    %2006 = vmatpush1.bf16.msra.mxu0 %v1402
    %2007 = vmatprep.subr.bf16.mxu0 %v1399
    %2008 = vmatpush1.bf16.msra.mxu0 %v1398
    %2009 = vmatprep.subr.bf16.mxu0 %v1395
    %2010 = vmatpush1.bf16.msra.mxu0 %v1394
    %2011 = vmatprep.subr.bf16.mxu0 %v1391
    %2012 = vmatpush1.bf16.msra.mxu0 %v1390
    %2013 = vmatprep.subr.bf16.mxu0 %v1387
    %2014 = vmatpush1.bf16.msra.mxu0 %v1386
    %2015 = vmatprep.subr.bf16.mxu0 %v1383
    %2016 = vmatpush1.bf16.msra.mxu0 %v1382
    %2017 = vmatprep.subr.bf16.mxu0 %v1443
    %2018 = vmatpush2.bf16.msra.mxu0 %v1442
    %2019 = vmatprep.subr.bf16.mxu0 %v1439
    %2020 = vmatpush2.bf16.msra.mxu0 %v1438
    %2021 = vmatprep.subr.bf16.mxu0 %v1435
    %2022 = vmatpush2.bf16.msra.mxu0 %v1434
    %2023 = vmatprep.subr.bf16.mxu0 %v1431
    %2024 = vmatpush2.bf16.msra.mxu0 %v1430
    %2025 = vmatprep.subr.bf16.mxu0 %v1427
    %2026 = vmatpush2.bf16.msra.mxu0 %v1426
    %2027 = vmatprep.subr.bf16.mxu0 %v1423
    %2028 = vmatpush2.bf16.msra.mxu0 %v1422
    %2029 = vmatprep.subr.bf16.mxu0 %v1419
    %2030 = vmatpush2.bf16.msra.mxu0 %v1418
    %2031 = vmatprep.subr.bf16.mxu0 %v1415
    %2032 = vmatpush2.bf16.msra.mxu0 %v1414
    %2033 = vmatprep.mubr.bf16.mxu0 %v411
    %2034 = vmatmul.mubr.bf16.gmra.mxu0 %v410
    %v2035 = vpop.f32.mrf.mxu0
    %v2036 = vadd.f32 %v1993, %v2035
    %v2037 = vpop.f32.mrf.mxu0
    %v2038 = vadd.f32 %v1995, %v2037
    %v2039 = vpop.f32.mrf.mxu0
    %v2040 = vadd.f32 %v1997, %v2039
    %v2041 = vpop.f32.mrf.mxu0
    %v2042 = vadd.f32 %v1999, %v2041
    %2043 = vdwg.mxu0
    %v2044 = vmax.f32 %v1864, 0.0
    %v2045 = vmax.f32 %v1866, 0.0
    %v2046 = vmax.f32 %v2036, 0.0
    %v2047 = vmax.f32 %v2038, 0.0
    %v2048 = vmax.f32 %v1868, 0.0
    %v2049 = vmax.f32 %v1870, 0.0
    %v2050 = vmax.f32 %v2040, 0.0
    %v2051 = vmax.f32 %v2042, 0.0
    %v2052 = vpack.c.bf16 %v2048, %v2044
    %v2053 = vpack.c.bf16 %v2049, %v2045
    %v2054 = vpack.c.bf16 %v2050, %v2046
    %v2055 = vpack.c.bf16 %v2051, %v2047
    %v2056 = vld [vmem:[#allocation8] sm:$0xff]
    %v2057 = vld [vmem:[#allocation8 + $0x8] sm:$0xff]
    %v2058 = vld [vmem:[#allocation8 + $0x10] sm:$0xff]
    %v2059 = vld [vmem:[#allocation8 + $0x18] sm:$0xff]
    %v2060 = vld [vmem:[#allocation8 + $0x20] sm:$0xff]
    %v2061 = vld [vmem:[#allocation8 + $0x28] sm:$0xff]
    %v2062 = vld [vmem:[#allocation8 + $0x30] sm:$0xff]
    %v2063 = vld [vmem:[#allocation8 + $0x38] sm:$0xff]
    %v2064 = vld [vmem:[#allocation8 + $0x40] sm:$0xff]
    %v2065 = vld [vmem:[#allocation8 + $0x48] sm:$0xff]
    %v2066 = vld [vmem:[#allocation8 + $0x50] sm:$0xff]
    %v2067 = vld [vmem:[#allocation8 + $0x58] sm:$0xff]
    %v2068 = vld [vmem:[#allocation8 + $0x60] sm:$0xff]
    %v2069 = vld [vmem:[#allocation8 + $0x68] sm:$0xff]
    %v2070 = vld [vmem:[#allocation8 + $0x70] sm:$0xff]
    %v2071 = vld [vmem:[#allocation8 + $0x78] sm:$0xff]
    %v2072 = vld [vmem:[#allocation8 + $0x80] sm:$0xff]
    %v2073 = vld [vmem:[#allocation8 + $0x88] sm:$0xff]
    %v2074 = vld [vmem:[#allocation8 + $0x90] sm:$0xff]
    %v2075 = vld [vmem:[#allocation8 + $0x98] sm:$0xff]
    %v2076 = vld [vmem:[#allocation8 + $0xa0] sm:$0xff]
    %v2077 = vld [vmem:[#allocation8 + $0xa8] sm:$0xff]
    %v2078 = vld [vmem:[#allocation8 + $0xb0] sm:$0xff]
    %v2079 = vld [vmem:[#allocation8 + $0xb8] sm:$0xff]
    %v2080 = vld [vmem:[#allocation8 + $0xc0] sm:$0xff]
    %v2081 = vld [vmem:[#allocation8 + $0xc8] sm:$0xff]
    %v2082 = vld [vmem:[#allocation8 + $0xd0] sm:$0xff]
    %v2083 = vld [vmem:[#allocation8 + $0xd8] sm:$0xff]
    %v2084 = vld [vmem:[#allocation8 + $0xe0] sm:$0xff]
    %v2085 = vld [vmem:[#allocation8 + $0xe8] sm:$0xff]
    %v2086 = vld [vmem:[#allocation8 + $0xf0] sm:$0xff]
    %v2087 = vld [vmem:[#allocation8 + $0xf8] sm:$0xff]
    %v2088 = vld [vmem:[#allocation8 + $0x100] sm:$0xff]
    %v2089 = vld [vmem:[#allocation8 + $0x108] sm:$0xff]
    %v2090 = vld [vmem:[#allocation8 + $0x110] sm:$0xff]
    %v2091 = vld [vmem:[#allocation8 + $0x118] sm:$0xff]
    %v2092 = vld [vmem:[#allocation8 + $0x120] sm:$0xff]
    %v2093 = vld [vmem:[#allocation8 + $0x128] sm:$0xff]
    %v2094 = vld [vmem:[#allocation8 + $0x130] sm:$0xff]
    %v2095 = vld [vmem:[#allocation8 + $0x138] sm:$0xff]
    %v2096 = vld [vmem:[#allocation8 + $0x140] sm:$0xff]
    %v2097 = vld [vmem:[#allocation8 + $0x148] sm:$0xff]
    %v2098 = vld [vmem:[#allocation8 + $0x150] sm:$0xff]
    %v2099 = vld [vmem:[#allocation8 + $0x158] sm:$0xff]
    %v2100 = vld [vmem:[#allocation8 + $0x160] sm:$0xff]
    %v2101 = vld [vmem:[#allocation8 + $0x168] sm:$0xff]
    %v2102 = vld [vmem:[#allocation8 + $0x170] sm:$0xff]
    %v2103 = vld [vmem:[#allocation8 + $0x178] sm:$0xff]
    %v2104 = vld [vmem:[#allocation8 + $0x180] sm:$0xff]
    %v2105 = vld [vmem:[#allocation8 + $0x188] sm:$0xff]
    %v2106 = vld [vmem:[#allocation8 + $0x190] sm:$0xff]
    %v2107 = vld [vmem:[#allocation8 + $0x198] sm:$0xff]
    %v2108 = vld [vmem:[#allocation8 + $0x1a0] sm:$0xff]
    %v2109 = vld [vmem:[#allocation8 + $0x1a8] sm:$0xff]
    %v2110 = vld [vmem:[#allocation8 + $0x1b0] sm:$0xff]
    %v2111 = vld [vmem:[#allocation8 + $0x1b8] sm:$0xff]
    %v2112 = vld [vmem:[#allocation8 + $0x1c0] sm:$0xff]
    %v2113 = vld [vmem:[#allocation8 + $0x1c8] sm:$0xff]
    %v2114 = vld [vmem:[#allocation8 + $0x1d0] sm:$0xff]
    %v2115 = vld [vmem:[#allocation8 + $0x1d8] sm:$0xff]
    %v2116 = vld [vmem:[#allocation8 + $0x1e0] sm:$0xff]
    %v2117 = vld [vmem:[#allocation8 + $0x1e8] sm:$0xff]
    %v2118 = vld [vmem:[#allocation8 + $0x1f0] sm:$0xff]
    %v2119 = vld [vmem:[#allocation8 + $0x1f8] sm:$0xff]
    %v2120 = vld [vmem:[%s4] sm:$0x3]
    %v2122 = vlaneseq
    %v2123 = vshrl.u32 %v2122, 7
    %v2124 = vsub.s32 0, %v2123
    %v2125 = vrot.slane %v2120, %v2124
    %v2126 = vlaneseq
    %v2127 = vshrl.u32 %v2126, 7
    %v2128 = vsub.s32 1, %v2127
    %v2129 = vrot.slane %v2120, %v2128
    %v2196 = vunpack.c.l.b16 %v2056
    %v2197 = vunpack.c.h.b16 %v2056
    %v2198 = vunpack.c.l.b16 %v2057
    %v2199 = vunpack.c.h.b16 %v2057
    %v2200 = vunpack.c.l.b16 %v2058
    %v2201 = vunpack.c.h.b16 %v2058
    %v2202 = vunpack.c.l.b16 %v2059
    %v2203 = vunpack.c.h.b16 %v2059
    %v2204 = vunpack.c.l.b16 %v2060
    %v2205 = vunpack.c.h.b16 %v2060
    %v2206 = vunpack.c.l.b16 %v2061
    %v2207 = vunpack.c.h.b16 %v2061
    %v2208 = vunpack.c.l.b16 %v2062
    %v2209 = vunpack.c.h.b16 %v2062
    %v2210 = vunpack.c.l.b16 %v2063
    %v2211 = vunpack.c.h.b16 %v2063
    %v2212 = vunpack.c.l.b16 %v2064
    %v2213 = vunpack.c.h.b16 %v2064
    %v2214 = vunpack.c.l.b16 %v2065
    %v2215 = vunpack.c.h.b16 %v2065
    %v2216 = vunpack.c.l.b16 %v2066
    %v2217 = vunpack.c.h.b16 %v2066
    %v2218 = vunpack.c.l.b16 %v2067
    %v2219 = vunpack.c.h.b16 %v2067
    %v2220 = vunpack.c.l.b16 %v2068
    %v2221 = vunpack.c.h.b16 %v2068
    %v2222 = vunpack.c.l.b16 %v2069
    %v2223 = vunpack.c.h.b16 %v2069
    %v2224 = vunpack.c.l.b16 %v2070
    %v2225 = vunpack.c.h.b16 %v2070
    %v2226 = vunpack.c.l.b16 %v2071
    %v2227 = vunpack.c.h.b16 %v2071
    %v2228 = vunpack.c.l.b16 %v2072
    %v2229 = vunpack.c.h.b16 %v2072
    %v2230 = vunpack.c.l.b16 %v2073
    %v2231 = vunpack.c.h.b16 %v2073
    %v2232 = vunpack.c.l.b16 %v2074
    %v2233 = vunpack.c.h.b16 %v2074
    %v2234 = vunpack.c.l.b16 %v2075
    %v2235 = vunpack.c.h.b16 %v2075
    %v2236 = vunpack.c.l.b16 %v2076
    %v2237 = vunpack.c.h.b16 %v2076
    %v2238 = vunpack.c.l.b16 %v2077
    %v2239 = vunpack.c.h.b16 %v2077
    %v2240 = vunpack.c.l.b16 %v2078
    %v2241 = vunpack.c.h.b16 %v2078
    %v2242 = vunpack.c.l.b16 %v2079
    %v2243 = vunpack.c.h.b16 %v2079
    %v2244 = vunpack.c.l.b16 %v2080
    %v2245 = vunpack.c.h.b16 %v2080
    %v2246 = vunpack.c.l.b16 %v2081
    %v2247 = vunpack.c.h.b16 %v2081
    %v2248 = vunpack.c.l.b16 %v2082
    %v2249 = vunpack.c.h.b16 %v2082
    %v2250 = vunpack.c.l.b16 %v2083
    %v2251 = vunpack.c.h.b16 %v2083
    %v2252 = vunpack.c.l.b16 %v2084
    %v2253 = vunpack.c.h.b16 %v2084
    %v2254 = vunpack.c.l.b16 %v2085
    %v2255 = vunpack.c.h.b16 %v2085
    %v2256 = vunpack.c.l.b16 %v2086
    %v2257 = vunpack.c.h.b16 %v2086
    %v2258 = vunpack.c.l.b16 %v2087
    %v2259 = vunpack.c.h.b16 %v2087
    %v2260 = vunpack.c.l.b16 %v2088
    %v2261 = vunpack.c.h.b16 %v2088
    %v2262 = vunpack.c.l.b16 %v2089
    %v2263 = vunpack.c.h.b16 %v2089
    %v2264 = vunpack.c.l.b16 %v2090
    %v2265 = vunpack.c.h.b16 %v2090
    %v2266 = vunpack.c.l.b16 %v2091
    %v2267 = vunpack.c.h.b16 %v2091
    %v2268 = vunpack.c.l.b16 %v2092
    %v2269 = vunpack.c.h.b16 %v2092
    %v2270 = vunpack.c.l.b16 %v2093
    %v2271 = vunpack.c.h.b16 %v2093
    %v2272 = vunpack.c.l.b16 %v2094
    %v2273 = vunpack.c.h.b16 %v2094
    %v2274 = vunpack.c.l.b16 %v2095
    %v2275 = vunpack.c.h.b16 %v2095
    %v2276 = vunpack.c.l.b16 %v2096
    %v2277 = vunpack.c.h.b16 %v2096
    %v2278 = vunpack.c.l.b16 %v2097
    %v2279 = vunpack.c.h.b16 %v2097
    %v2280 = vunpack.c.l.b16 %v2098
    %v2281 = vunpack.c.h.b16 %v2098
    %v2282 = vunpack.c.l.b16 %v2099
    %v2283 = vunpack.c.h.b16 %v2099
    %v2284 = vunpack.c.l.b16 %v2100
    %v2285 = vunpack.c.h.b16 %v2100
    %v2286 = vunpack.c.l.b16 %v2101
    %v2287 = vunpack.c.h.b16 %v2101
    %v2288 = vunpack.c.l.b16 %v2102
    %v2289 = vunpack.c.h.b16 %v2102
    %v2290 = vunpack.c.l.b16 %v2103
    %v2291 = vunpack.c.h.b16 %v2103
    %v2292 = vunpack.c.l.b16 %v2104
    %v2293 = vunpack.c.h.b16 %v2104
    %v2294 = vunpack.c.l.b16 %v2105
    %v2295 = vunpack.c.h.b16 %v2105
    %v2296 = vunpack.c.l.b16 %v2106
    %v2297 = vunpack.c.h.b16 %v2106
    %v2298 = vunpack.c.l.b16 %v2107
    %v2299 = vunpack.c.h.b16 %v2107
    %v2300 = vunpack.c.l.b16 %v2108
    %v2301 = vunpack.c.h.b16 %v2108
    %v2302 = vunpack.c.l.b16 %v2109
    %v2303 = vunpack.c.h.b16 %v2109
    %v2304 = vunpack.c.l.b16 %v2110
    %v2305 = vunpack.c.h.b16 %v2110
    %v2306 = vunpack.c.l.b16 %v2111
    %v2307 = vunpack.c.h.b16 %v2111
    %v2308 = vunpack.c.l.b16 %v2112
    %v2309 = vunpack.c.h.b16 %v2112
    %v2310 = vunpack.c.l.b16 %v2113
    %v2311 = vunpack.c.h.b16 %v2113
    %v2312 = vunpack.c.l.b16 %v2114
    %v2313 = vunpack.c.h.b16 %v2114
    %v2314 = vunpack.c.l.b16 %v2115
    %v2315 = vunpack.c.h.b16 %v2115
    %v2316 = vunpack.c.l.b16 %v2116
    %v2317 = vunpack.c.h.b16 %v2116
    %v2318 = vunpack.c.l.b16 %v2117
    %v2319 = vunpack.c.h.b16 %v2117
    %v2320 = vunpack.c.l.b16 %v2118
    %v2321 = vunpack.c.h.b16 %v2118
    %v2322 = vunpack.c.l.b16 %v2119
    %v2323 = vunpack.c.h.b16 %v2119
    %v2324 = vpack.c.b16 %v2198, %v2196
    %v2325 = vpack.c.b16 %v2199, %v2197
    %v2326 = vpack.c.b16 %v2202, %v2200
    %v2327 = vpack.c.b16 %v2203, %v2201
    %v2328 = vpack.c.b16 %v2206, %v2204
    %v2329 = vpack.c.b16 %v2207, %v2205
    %v2330 = vpack.c.b16 %v2210, %v2208
    %v2331 = vpack.c.b16 %v2211, %v2209
    %v2332 = vpack.c.b16 %v2214, %v2212
    %v2333 = vpack.c.b16 %v2215, %v2213
    %v2334 = vpack.c.b16 %v2218, %v2216
    %v2335 = vpack.c.b16 %v2219, %v2217
    %v2336 = vpack.c.b16 %v2222, %v2220
    %v2337 = vpack.c.b16 %v2223, %v2221
    %v2338 = vpack.c.b16 %v2226, %v2224
    %v2339 = vpack.c.b16 %v2227, %v2225
    %v2340 = vpack.c.b16 %v2230, %v2228
    %v2341 = vpack.c.b16 %v2231, %v2229
    %v2342 = vpack.c.b16 %v2234, %v2232
    %v2343 = vpack.c.b16 %v2235, %v2233
    %v2344 = vpack.c.b16 %v2238, %v2236
    %v2345 = vpack.c.b16 %v2239, %v2237
    %v2346 = vpack.c.b16 %v2242, %v2240
    %v2347 = vpack.c.b16 %v2243, %v2241
    %v2348 = vpack.c.b16 %v2246, %v2244
    %v2349 = vpack.c.b16 %v2247, %v2245
    %v2350 = vpack.c.b16 %v2250, %v2248
    %v2351 = vpack.c.b16 %v2251, %v2249
    %v2352 = vpack.c.b16 %v2254, %v2252
    %v2353 = vpack.c.b16 %v2255, %v2253
    %v2354 = vpack.c.b16 %v2258, %v2256
    %v2355 = vpack.c.b16 %v2259, %v2257
    %v2356 = vpack.c.b16 %v2262, %v2260
    %v2357 = vpack.c.b16 %v2263, %v2261
    %v2358 = vpack.c.b16 %v2266, %v2264
    %v2359 = vpack.c.b16 %v2267, %v2265
    %v2360 = vpack.c.b16 %v2270, %v2268
    %v2361 = vpack.c.b16 %v2271, %v2269
    %v2362 = vpack.c.b16 %v2274, %v2272
    %v2363 = vpack.c.b16 %v2275, %v2273
    %v2364 = vpack.c.b16 %v2278, %v2276
    %v2365 = vpack.c.b16 %v2279, %v2277
    %v2366 = vpack.c.b16 %v2282, %v2280
    %v2367 = vpack.c.b16 %v2283, %v2281
    %v2368 = vpack.c.b16 %v2286, %v2284
    %v2369 = vpack.c.b16 %v2287, %v2285
    %v2370 = vpack.c.b16 %v2290, %v2288
    %v2371 = vpack.c.b16 %v2291, %v2289
    %v2372 = vpack.c.b16 %v2294, %v2292
    %v2373 = vpack.c.b16 %v2295, %v2293
    %v2374 = vpack.c.b16 %v2298, %v2296
    %v2375 = vpack.c.b16 %v2299, %v2297
    %v2376 = vpack.c.b16 %v2302, %v2300
    %v2377 = vpack.c.b16 %v2303, %v2301
    %v2378 = vpack.c.b16 %v2306, %v2304
    %v2379 = vpack.c.b16 %v2307, %v2305
    %v2380 = vpack.c.b16 %v2310, %v2308
    %v2381 = vpack.c.b16 %v2311, %v2309
    %v2382 = vpack.c.b16 %v2314, %v2312
    %v2383 = vpack.c.b16 %v2315, %v2313
    %v2384 = vpack.c.b16 %v2318, %v2316
    %v2385 = vpack.c.b16 %v2319, %v2317
    %v2386 = vpack.c.b16 %v2322, %v2320
    %v2387 = vpack.c.b16 %v2323, %v2321
    %2452 = vmatprep.subr.bf16.mxu0 %v2339
    %2453 = vmatpush1.bf16.msra.mxu0 %v2338
    %2454 = vmatprep.subr.bf16.mxu0 %v2337
    %2455 = vmatpush1.bf16.msra.mxu0 %v2336
    %2456 = vmatprep.subr.bf16.mxu0 %v2335
    %2457 = vmatpush1.bf16.msra.mxu0 %v2334
    %2458 = vmatprep.subr.bf16.mxu0 %v2333
    %2459 = vmatpush1.bf16.msra.mxu0 %v2332
    %2460 = vmatprep.subr.bf16.mxu0 %v2331
    %2461 = vmatpush1.bf16.msra.mxu0 %v2330
    %2462 = vmatprep.subr.bf16.mxu0 %v2329
    %2463 = vmatpush1.bf16.msra.mxu0 %v2328
    %2464 = vmatprep.subr.bf16.mxu0 %v2327
    %2465 = vmatpush1.bf16.msra.mxu0 %v2326
    %2466 = vmatprep.subr.bf16.mxu0 %v2325
    %2467 = vmatpush1.bf16.msra.mxu0 %v2324
    %2468 = vmatprep.subr.bf16.mxu0 %v2355
    %2469 = vmatpush2.bf16.msra.mxu0 %v2354
    %2470 = vmatprep.subr.bf16.mxu0 %v2353
    %2471 = vmatpush2.bf16.msra.mxu0 %v2352
    %2472 = vmatprep.subr.bf16.mxu0 %v2351
    %2473 = vmatpush2.bf16.msra.mxu0 %v2350
    %2474 = vmatprep.subr.bf16.mxu0 %v2349
    %2475 = vmatpush2.bf16.msra.mxu0 %v2348
    %2476 = vmatprep.subr.bf16.mxu0 %v2347
    %2477 = vmatpush2.bf16.msra.mxu0 %v2346
    %2478 = vmatprep.subr.bf16.mxu0 %v2345
    %2479 = vmatpush2.bf16.msra.mxu0 %v2344
    %2480 = vmatprep.subr.bf16.mxu0 %v2343
    %2481 = vmatpush2.bf16.msra.mxu0 %v2342
    %2482 = vmatprep.subr.bf16.mxu0 %v2341
    %2483 = vmatpush2.bf16.msra.mxu0 %v2340
    %2484 = vmatprep.mubr.bf16.mxu0 %v2053
    %2485 = vmatmul.mubr.bf16.gmra.mxu0 %v2052
    %v2486 = vpop.f32.mrf.mxu0
    %v2487 = vadd.f32 %v2125, %v2486
    %v2488 = vpop.f32.mrf.mxu0
    %v2489 = vadd.f32 %v2129, %v2488
    %v2490 = vpop.f32.mrf.mxu0
    %v2491 = vadd.f32 %v2125, %v2490
    %v2492 = vpop.f32.mrf.mxu0
    %v2493 = vadd.f32 %v2129, %v2492
    %2494 = vdwg.mxu0
    %2495 = vmatprep.subr.bf16.mxu0 %v2371
    %2496 = vmatpush1.bf16.msra.mxu0 %v2370
    %2497 = vmatprep.subr.bf16.mxu0 %v2369
    %2498 = vmatpush1.bf16.msra.mxu0 %v2368
    %2499 = vmatprep.subr.bf16.mxu0 %v2367
    %2500 = vmatpush1.bf16.msra.mxu0 %v2366
    %2501 = vmatprep.subr.bf16.mxu0 %v2365
    %2502 = vmatpush1.bf16.msra.mxu0 %v2364
    %2503 = vmatprep.subr.bf16.mxu0 %v2363
    %2504 = vmatpush1.bf16.msra.mxu0 %v2362
    %2505 = vmatprep.subr.bf16.mxu0 %v2361
    %2506 = vmatpush1.bf16.msra.mxu0 %v2360
    %2507 = vmatprep.subr.bf16.mxu0 %v2359
    %2508 = vmatpush1.bf16.msra.mxu0 %v2358
    %2509 = vmatprep.subr.bf16.mxu0 %v2357
    %2510 = vmatpush1.bf16.msra.mxu0 %v2356
    %2511 = vmatprep.subr.bf16.mxu0 %v2387
    %2512 = vmatpush2.bf16.msra.mxu0 %v2386
    %2513 = vmatprep.subr.bf16.mxu0 %v2385
    %2514 = vmatpush2.bf16.msra.mxu0 %v2384
    %2515 = vmatprep.subr.bf16.mxu0 %v2383
    %2516 = vmatpush2.bf16.msra.mxu0 %v2382
    %2517 = vmatprep.subr.bf16.mxu0 %v2381
    %2518 = vmatpush2.bf16.msra.mxu0 %v2380
    %2519 = vmatprep.subr.bf16.mxu0 %v2379
    %2520 = vmatpush2.bf16.msra.mxu0 %v2378
    %2521 = vmatprep.subr.bf16.mxu0 %v2377
    %2522 = vmatpush2.bf16.msra.mxu0 %v2376
    %2523 = vmatprep.subr.bf16.mxu0 %v2375
    %2524 = vmatpush2.bf16.msra.mxu0 %v2374
    %2525 = vmatprep.subr.bf16.mxu0 %v2373
    %2526 = vmatpush2.bf16.msra.mxu0 %v2372
    %2527 = vmatprep.mubr.bf16.mxu0 %v2055
    %2528 = vmatmul.mubr.bf16.gmra.mxu0 %v2054
    %v2529 = vpop.f32.mrf.mxu0
    %v2530 = vadd.f32 %v2487, %v2529
    %v2531 = vpop.f32.mrf.mxu0
    %v2532 = vadd.f32 %v2489, %v2531
    %v2533 = vpop.f32.mrf.mxu0
    %v2534 = vadd.f32 %v2491, %v2533
    %v2535 = vpop.f32.mrf.mxu0
    %v2536 = vadd.f32 %v2493, %v2535
    %2537 = vdwg.mxu0
    %v2538 = vmax.f32 %v2530, 0.0
    %v2539 = vmax.f32 %v2532, 0.0
    %v2540 = vmax.f32 %v2534, 0.0
    %v2541 = vmax.f32 %v2536, 0.0
    %v2542 = vpack.c.bf16 %v2540, %v2538
    %v2543 = vpack.c.bf16 %v2541, %v2539
    %v2544 = vld [vmem:[#allocation10] sm:$0xf]
    %v2545 = vld [vmem:[#allocation10 + $0x4] sm:$0xf]
    %v2546 = vld [vmem:[#allocation10 + $0x8] sm:$0xf]
    %v2547 = vld [vmem:[#allocation10 + $0xc] sm:$0xf]
    %v2548 = vld [vmem:[#allocation10 + $0x10] sm:$0xf]
    %v2549 = vld [vmem:[#allocation10 + $0x14] sm:$0xf]
    %v2550 = vld [vmem:[#allocation10 + $0x18] sm:$0xf]
    %v2551 = vld [vmem:[#allocation10 + $0x1c] sm:$0xf]
    %v2552 = vld [vmem:[#allocation10 + $0x20] sm:$0xf]
    %v2553 = vld [vmem:[#allocation10 + $0x24] sm:$0xf]
    %v2554 = vld [vmem:[#allocation10 + $0x28] sm:$0xf]
    %v2555 = vld [vmem:[#allocation10 + $0x2c] sm:$0xf]
    %v2556 = vld [vmem:[#allocation10 + $0x30] sm:$0xf]
    %v2557 = vld [vmem:[#allocation10 + $0x34] sm:$0xf]
    %v2558 = vld [vmem:[#allocation10 + $0x38] sm:$0xf]
    %v2559 = vld [vmem:[#allocation10 + $0x3c] sm:$0xf]
    %v2560 = vld [vmem:[#allocation10 + $0x40] sm:$0xf]
    %v2561 = vld [vmem:[#allocation10 + $0x44] sm:$0xf]
    %v2562 = vld [vmem:[#allocation10 + $0x48] sm:$0xf]
    %v2563 = vld [vmem:[#allocation10 + $0x4c] sm:$0xf]
    %v2564 = vld [vmem:[#allocation10 + $0x50] sm:$0xf]
    %v2565 = vld [vmem:[#allocation10 + $0x54] sm:$0xf]
    %v2566 = vld [vmem:[#allocation10 + $0x58] sm:$0xf]
    %v2567 = vld [vmem:[#allocation10 + $0x5c] sm:$0xf]
    %v2568 = vld [vmem:[#allocation10 + $0x60] sm:$0xf]
    %v2569 = vld [vmem:[#allocation10 + $0x64] sm:$0xf]
    %v2570 = vld [vmem:[#allocation10 + $0x68] sm:$0xf]
    %v2571 = vld [vmem:[#allocation10 + $0x6c] sm:$0xf]
    %v2572 = vld [vmem:[#allocation10 + $0x70] sm:$0xf]
    %v2573 = vld [vmem:[#allocation10 + $0x74] sm:$0xf]
    %v2574 = vld [vmem:[#allocation10 + $0x78] sm:$0xf]
    %v2575 = vld [vmem:[#allocation10 + $0x7c] sm:$0xf]
    %v2576 = vld [vmem:[%s6] sm:$0x1]
    %v2578 = vlaneseq
    %v2579 = vshrl.u32 %v2578, 7
    %v2580 = vsub.s32 0, %v2579
    %v2581 = vrot.slane %v2576, %v2580
    %v2615 = vunpack.c.l.b16 %v2544
    %v2616 = vunpack.c.l.b16 %v2545
    %v2617 = vunpack.c.l.b16 %v2546
    %v2618 = vunpack.c.l.b16 %v2547
    %v2619 = vunpack.c.l.b16 %v2548
    %v2620 = vunpack.c.l.b16 %v2549
    %v2621 = vunpack.c.l.b16 %v2550
    %v2622 = vunpack.c.l.b16 %v2551
    %v2623 = vunpack.c.l.b16 %v2552
    %v2624 = vunpack.c.l.b16 %v2553
    %v2625 = vunpack.c.l.b16 %v2554
    %v2626 = vunpack.c.l.b16 %v2555
    %v2627 = vunpack.c.l.b16 %v2556
    %v2628 = vunpack.c.l.b16 %v2557
    %v2629 = vunpack.c.l.b16 %v2558
    %v2630 = vunpack.c.l.b16 %v2559
    %v2631 = vunpack.c.l.b16 %v2560
    %v2632 = vunpack.c.l.b16 %v2561
    %v2633 = vunpack.c.l.b16 %v2562
    %v2634 = vunpack.c.l.b16 %v2563
    %v2635 = vunpack.c.l.b16 %v2564
    %v2636 = vunpack.c.l.b16 %v2565
    %v2637 = vunpack.c.l.b16 %v2566
    %v2638 = vunpack.c.l.b16 %v2567
    %v2639 = vunpack.c.l.b16 %v2568
    %v2640 = vunpack.c.l.b16 %v2569
    %v2641 = vunpack.c.l.b16 %v2570
    %v2642 = vunpack.c.l.b16 %v2571
    %v2643 = vunpack.c.l.b16 %v2572
    %v2644 = vunpack.c.l.b16 %v2573
    %v2645 = vunpack.c.l.b16 %v2574
    %v2646 = vunpack.c.l.b16 %v2575
    %v2647 = vpack.c.b16 %v2616, %v2615
    %v2648 = vpack.c.b16 %v2618, %v2617
    %v2649 = vpack.c.b16 %v2620, %v2619
    %v2650 = vpack.c.b16 %v2622, %v2621
    %v2651 = vpack.c.b16 %v2624, %v2623
    %v2652 = vpack.c.b16 %v2626, %v2625
    %v2653 = vpack.c.b16 %v2628, %v2627
    %v2654 = vpack.c.b16 %v2630, %v2629
    %v2655 = vpack.c.b16 %v2632, %v2631
    %v2656 = vpack.c.b16 %v2634, %v2633
    %v2657 = vpack.c.b16 %v2636, %v2635
    %v2658 = vpack.c.b16 %v2638, %v2637
    %v2659 = vpack.c.b16 %v2640, %v2639
    %v2660 = vpack.c.b16 %v2642, %v2641
    %v2661 = vpack.c.b16 %v2644, %v2643
    %v2662 = vpack.c.b16 %v2646, %v2645
    %2679 = vmatprep.subr.bf16.mxu0 0
    %2680 = vmatpush1.bf16.msra.mxu0 %v2654
    %2681 = vmatprep.subr.bf16.mxu0 0
    %2682 = vmatpush1.bf16.msra.mxu0 %v2653
    %2683 = vmatprep.subr.bf16.mxu0 0
    %2684 = vmatpush1.bf16.msra.mxu0 %v2652
    %2685 = vmatprep.subr.bf16.mxu0 0
    %2686 = vmatpush1.bf16.msra.mxu0 %v2651
    %2687 = vmatprep.subr.bf16.mxu0 0
    %2688 = vmatpush1.bf16.msra.mxu0 %v2650
    %2689 = vmatprep.subr.bf16.mxu0 0
    %2690 = vmatpush1.bf16.msra.mxu0 %v2649
    %2691 = vmatprep.subr.bf16.mxu0 0
    %2692 = vmatpush1.bf16.msra.mxu0 %v2648
    %2693 = vmatprep.subr.bf16.mxu0 0
    %2694 = vmatpush1.bf16.msra.mxu0 %v2647
    %2695 = vmatprep.subr.bf16.mxu0 0
    %2696 = vmatpush2.bf16.msra.mxu0 %v2662
    %2697 = vmatprep.subr.bf16.mxu0 0
    %2698 = vmatpush2.bf16.msra.mxu0 %v2661
    %2699 = vmatprep.subr.bf16.mxu0 0
    %2700 = vmatpush2.bf16.msra.mxu0 %v2660
    %2701 = vmatprep.subr.bf16.mxu0 0
    %2702 = vmatpush2.bf16.msra.mxu0 %v2659
    %2703 = vmatprep.subr.bf16.mxu0 0
    %2704 = vmatpush2.bf16.msra.mxu0 %v2658
    %2705 = vmatprep.subr.bf16.mxu0 0
    %2706 = vmatpush2.bf16.msra.mxu0 %v2657
    %2707 = vmatprep.subr.bf16.mxu0 0
    %2708 = vmatpush2.bf16.msra.mxu0 %v2656
    %2709 = vmatprep.subr.bf16.mxu0 0
    %2710 = vmatpush2.bf16.msra.mxu0 %v2655
    %2711 = vmatprep.mubr.bf16.mxu0 %v2543
    %2712 = vmatmul.mubr.bf16.gmra.mxu0 %v2542
    %v2713 = vpop.f32.mrf.mxu0
    %v2714 = vadd.f32 %v2581, %v2713
    %v2715 = vpop.f32.mrf.mxu0
    %v2716 = vpop.f32.mrf.mxu0
    %v2717 = vadd.f32 %v2581, %v2716
    %v2718 = vpop.f32.mrf.mxu0
    %2719 = vdwg.mxu0
    %v2720 = vtanh.pop %v2714
    %v2721 = vtanh.pop %v2717
    %2722 = vst [vmem:[#allocation11] sm:$0xff] %v2720
    %2723 = vst [vmem:[#allocation11 + $0x8] sm:$0xff] %v2721
    // Predicated region
    $region50: #{tpu_custom_call.1} parent=1 // pred_check
      _
    $region51: #{tpu_custom_call.1} parent=1 // pred_check_branch
      %2725 = sbr.rel (0) target = $region53
    $region52: #{tpu_custom_call.1} parent=1 // pred_region
      %s2727 = ssub.s32 256, 256
      %2728 = vsyncadd [#allocation4], %s2727
      %s2729 = sshll.u32 [#allocation11], 4
      %s2730 = int_to_ptr.vmem [resolvable:$true] %s2729
      %2735 = dma.vmem_to_hbm [thread:$0]  %s2730, 256, %s7, [#allocation4], 128, 128, 8
    $region53: #{tpu_custom_call.1} parent=1 // pred_fallthru
      _
    // Predicated region
    $region54: #{tpu_custom_call.1} parent=1 // pred_check
      _
    $region55: #{tpu_custom_call.1} parent=1 // pred_check_branch
      %2737 = sbr.rel (0) target = $region57
    $region56: #{tpu_custom_call.1} parent=1 // pred_region
      %2738 = dma.done [#allocation4], 256
    $region57: #{tpu_custom_call.1} parent=1 // pred_fallthru
      _
    %2739 = vsyncpa [#allocation3], 1
    %2740 = vsyncpa [#allocation6], 1
    %2741 = vsyncpa [#allocation9], 1
    %2742 = vsyncpa [#allocation4], 1

</llo_original>
